<compile_context>
chip_gen: v6e
topology: v6e:2x2x1
jax: 0.10.0
libtpu: 0.0.40
codegen_flags: <defaults>
</compile_context>

<pallas_src>
import jax
import jax.numpy as jnp
from jax.experimental import pallas as pl
from jax.experimental.pallas import tpu as pltpu

EMBED_DIM = 100
HIDDEN_DIM = 128
VOCAB_SIZE = 2000 + 1   # min_vocab_size + 1
NUM_CLASSES = 2
B_BLK = 8               # batch rows per grid step (sublane-aligned)


def lstm_kernel(gx_ref, whh_ref, h_ref):
    """LSTM recurrence over pre-projected input gates.

    gx_ref : (T, B_BLK, 4H) f32  -- x_t @ W_ih + b_ih + b_hh, time-major,
                                    gate columns permuted to [i, f, o, g]
    whh_ref: (H, 4H)        bf16 -- recurrent weights (right-multiply form,
                                    same [i, f, o, g] column order)
    h_ref  : (B_BLK, H)     f32  -- final hidden state h_T
    """
    T, B, _G = gx_ref.shape
    H = whh_ref.shape[0]

    h0 = jnp.zeros((B, H), jnp.bfloat16)   # h carried in bf16 (MXU operand dtype)
    c0 = jnp.zeros((B, H), jnp.float32)

    def step(t, carry):
        h, c = carry
        # Re-read W_hh from VMEM every step instead of pinning 32 vregs live
        # across the fully unrolled loop (vld slots are plentiful; spills are not).
        whh = whh_ref[...]                                  # (H, 4H) bf16
        gates = gx_ref[t] + jnp.dot(h, whh, preferred_element_type=jnp.float32)
        # Gate order [i, f, o, g]: one contiguous 3H sigmoid + one H tanh.
        sig = jax.nn.sigmoid(gates[:, : 3 * H])             # (B, 3H) f32
        i_g = sig[:, 0 * H:1 * H]
        f_g = sig[:, 1 * H:2 * H]
        o_g = sig[:, 2 * H:3 * H]
        g_g = jnp.tanh(gates[:, 3 * H:])                    # (B, H) f32
        c_new = f_g * c + i_g * g_g                         # f32 cell state
        h_new = (o_g * jnp.tanh(c_new)).astype(jnp.bfloat16)
        return (h_new, c_new)

    # T is static and small: fully unroll so adjacent timesteps interleave on
    # the MXU / EUP / VPU slots.
    h_last, _ = jax.lax.fori_loop(0, T, step, (h0, c0), unroll=True)
    h_ref[...] = h_last.astype(jnp.float32)


def lstm_pallas(gates_x, w_hh_bf16):
    """gates_x: (T, B_pad, 4H) f32; w_hh_bf16: (H, 4H) bf16 -> (B_pad, H) f32."""
    T, B_pad, G = gates_x.shape
    H = w_hh_bf16.shape[0]
    # Batch grid axis: on v7x / megacore parts, batch blocks shard across cores.
    # TODO(synk): for long sequences on v7x (64 MiB VMEM), stream gates_x over a
    # T grid axis ("arbitrary") with h/c in VMEM scratch instead of full residency.
    grid = (B_pad // B_BLK,)
    return pl.pallas_call(
        lstm_kernel,
        out_shape=jax.ShapeDtypeStruct((B_pad, H), jnp.float32),
        grid=grid,
        in_specs=[
            pl.BlockSpec((T, B_BLK, G), lambda b: (0, b, 0)),
            pl.BlockSpec((H, G), lambda b: (0, 0)),
        ],
        out_specs=pl.BlockSpec((B_BLK, H), lambda b: (b, 0)),
        compiler_params=pltpu.CompilerParams(
            dimension_semantics=("parallel",)),
    )(gates_x, w_hh_bf16)


def _reorder_gate_cols(m):
    """Permute gate columns from PyTorch order [i, f, g, o] to [i, f, o, g]."""
    H = HIDDEN_DIM
    return jnp.concatenate(
        [m[..., : 2 * H], m[..., 3 * H:], m[..., 2 * H:3 * H]], axis=-1)


def init_params(key):
    """Deterministic synthetic parameters matching the PyTorch module shapes."""
    ks = jax.random.split(key, 8)
    s_h = 1.0 / jnp.sqrt(HIDDEN_DIM)
    params = {
        "embedding": jax.random.normal(ks[0], (VOCAB_SIZE, EMBED_DIM), jnp.float32),
        # stored already transposed to right-multiply form, PyTorch gate order
        "w_ih": jax.random.uniform(ks[1], (EMBED_DIM, 4 * HIDDEN_DIM), jnp.float32, -s_h, s_h),
        "w_hh": jax.random.uniform(ks[2], (HIDDEN_DIM, 4 * HIDDEN_DIM), jnp.float32, -s_h, s_h),
        "b_ih": jax.random.uniform(ks[3], (4 * HIDDEN_DIM,), jnp.float32, -s_h, s_h),
        "b_hh": jax.random.uniform(ks[4], (4 * HIDDEN_DIM,), jnp.float32, -s_h, s_h),
        "w_fc": jax.random.uniform(ks[5], (HIDDEN_DIM, NUM_CLASSES), jnp.float32, -s_h, s_h),
        "b_fc": jax.random.uniform(ks[6], (NUM_CLASSES,), jnp.float32, -s_h, s_h),
    }
    return params


def forward(params, x):
    """Mirrors NewsClassifier.forward: x = x[0]; unsqueeze if 1-D; emb -> LSTM -> fc."""
    x0 = x[0]
    if x0.ndim == 1:
        x0 = x0[None, :]                                     # (B, T)
    B, T = x0.shape

    # One-time gate-column permutation to the kernel's [i, f, o, g] layout.
    w_ih = _reorder_gate_cols(params["w_ih"])                # (E, 4H)
    w_hh = _reorder_gate_cols(params["w_hh"])                # (H, 4H)
    b_sum = _reorder_gate_cols(params["b_ih"] + params["b_hh"])   # (4H,)

    # Time-major gather fused with the hoisted input projection (plain-JAX glue).
    # Bias is baked into gates_x here (padded batch rows stay harmlessly inert).
    # NOTE: for long sequences, cast operands to bf16 and pad E 100->128 so this
    # XLA matmul hits the fast MXU path; negligible at this toy size.
    emb_tm = params["embedding"][x0.T]                       # (T, B, E)
    gates_x = jnp.einsum("tbe,eg->tbg", emb_tm, w_ih) + b_sum    # (T, B, 4H) f32

    # Pad batch up to a multiple of B_BLK so B sits densely on the sublane axis.
    B_pad = max(B_BLK, ((B + B_BLK - 1) // B_BLK) * B_BLK)
    if B_pad != B:
        gates_x = jnp.pad(gates_x, ((0, 0), (0, B_pad - B), (0, 0)))

    h_last = lstm_pallas(gates_x.astype(jnp.float32),
                         w_hh.astype(jnp.bfloat16))          # (B_pad, H)
    h_last = h_last[:B]                                      # (B, H)

    # Lane-sparse classifier head (H -> 2) stays in plain JAX.
    return h_last @ params["w_fc"] + params["b_fc"]          # (B, 2)


def forward_ref(params, x):
    """Pure-JAX f32 reference matching PyTorch semantics (gate order [i, f, g, o])."""
    x0 = x[0]
    if x0.ndim == 1:
        x0 = x0[None, :]
    emb = params["embedding"][x0]                            # (B, T, E)
    H = HIDDEN_DIM
    b = params["b_ih"] + params["b_hh"]

    def step(carry, x_t):                                    # x_t: (B, E)
        h, c = carry
        gates = x_t @ params["w_ih"] + h @ params["w_hh"] + b
        i_g = jax.nn.sigmoid(gates[:, 0 * H:1 * H])
        f_g = jax.nn.sigmoid(gates[:, 1 * H:2 * H])
        g_g = jnp.tanh(gates[:, 2 * H:3 * H])
        o_g = jax.nn.sigmoid(gates[:, 3 * H:4 * H])
        c_new = f_g * c + i_g * g_g
        h_new = o_g * jnp.tanh(c_new)
        return (h_new, c_new), None

    B = emb.shape[0]
    init = (jnp.zeros((B, H), jnp.float32), jnp.zeros((B, H), jnp.float32))
    (h_last, _), _ = jax.lax.scan(step, init, jnp.transpose(emb, (1, 0, 2)))
    return h_last @ params["w_fc"] + params["b_fc"]


if __name__ == "__main__":
    key = jax.random.PRNGKey(0)
    k_param, k_data = jax.random.split(key)

    params = init_params(k_param)

    # Small token-id input (like padded headline indices): shape (2, 8).
    # forward() takes x[0] -> (8,) -> unsqueeze -> (1, 8), matching the module.
    SEQ = 8
    x = jax.random.randint(k_data, (2, SEQ), 0, VOCAB_SIZE, dtype=jnp.int32)

    out = forward(params, x)
    out = jax.block_until_ready(out)

    ref = jax.block_until_ready(forward_ref(params, x))
    assert out.shape == (1, NUM_CLASSES), out.shape
    # Looser tolerance vs the pure-f32 reference: the recurrent matmul uses bf16
    # operands (h carry + W_hh) on the MXU; accumulation and gate math stay f32.
    # At T=8 drift is tiny; for T in the hundreds, gate the bf16 path on length.
    assert jnp.allclose(out, ref, atol=2e-2, rtol=2e-2), (out, ref)

    print("KERNEL_OK")
</pallas_src>

<mosaic_0001>
module attributes {stable_mosaic.version = 11 : i64} {
  func.func @lstm_kernel(%arg0: i32, %arg1: memref<8x8x512xf32, #tpu.memory_space<vmem>>, %arg2: memref<128x512xbf16, #tpu.memory_space<vmem>>, %arg3: memref<8x128xf32, #tpu.memory_space<vmem>>) attributes {dimension_semantics = [#tpu.dimension_semantics<parallel>], iteration_bounds = array<i64: 1>, scalar_prefetch = 0 : i64, scratch_operands = 0 : i64, tpu.core_type = #tpu.core_type<tc>, window_params = [{transform_indices = @transform_0, window_bounds = array<i64: 8, 8, 512>}, {pipeline_mode = #tpu.pipeline_mode<synchronous>, transform_indices = @transform_1, window_bounds = array<i64: 128, 512>}, {transform_indices = @transform_2, window_bounds = array<i64: 8, 128>}]} {
    %cst = arith.constant 0.000000e+00 : bf16
    %0 = vector.broadcast %cst : bf16 to vector<8x128xbf16>
    %cst_0 = arith.constant 0.000000e+00 : f32
    %1 = vector.broadcast %cst_0 : f32 to vector<8x128xf32>
    %c0_i32 = arith.constant 0 : i32
    %c0 = arith.constant 0 : index
    %c0_1 = arith.constant 0 : index
    %2 = vector.load %arg2[%c0, %c0_1] : memref<128x512xbf16, #tpu.memory_space<vmem>>, vector<128x512xbf16>
    %3 = arith.index_cast %c0_i32 : i32 to index
    %c0_2 = arith.constant 0 : index
    %c0_3 = arith.constant 0 : index
    %4 = vector.load %arg1[%3, %c0_2, %c0_3] : memref<8x8x512xf32, #tpu.memory_space<vmem>>, vector<1x8x512xf32>
    %5 = vector.shape_cast %4 : vector<1x8x512xf32> to vector<8x512xf32>
    %cst_4 = arith.constant dense<0.000000e+00> : vector<8x512xf32>
    %6 = tpu.matmul %0, %2, %cst_4 {dimension_numbers = #tpu.dot_dimension_numbers<[1], [0], [0], [1], [0, 0, 1, 1], [], []>} : vector<8x128xbf16>, vector<128x512xbf16>, vector<8x512xf32> -> vector<8x512xf32>
    %7 = arith.addf %5, %6 : vector<8x512xf32>
    %8 = vector.extract_strided_slice %7 {offsets = [0, 0], sizes = [8, 384], strides = [1, 1]} : vector<8x512xf32> to vector<8x384xf32>
    %9 = arith.negf %8 : vector<8x384xf32>
    %10 = math.exp %9 : vector<8x384xf32>
    %cst_5 = arith.constant 1.000000e+00 : f32
    %11 = vector.broadcast %cst_5 : f32 to vector<8x384xf32>
    %12 = arith.addf %11, %10 : vector<8x384xf32>
    %13 = arith.divf %11, %12 : vector<8x384xf32>
    %14 = vector.extract_strided_slice %13 {offsets = [0, 0], sizes = [8, 128], strides = [1, 1]} : vector<8x384xf32> to vector<8x128xf32>
    %15 = vector.extract_strided_slice %13 {offsets = [0, 128], sizes = [8, 128], strides = [1, 1]} : vector<8x384xf32> to vector<8x128xf32>
    %16 = vector.extract_strided_slice %13 {offsets = [0, 256], sizes = [8, 128], strides = [1, 1]} : vector<8x384xf32> to vector<8x128xf32>
    %17 = vector.extract_strided_slice %7 {offsets = [0, 384], sizes = [8, 128], strides = [1, 1]} : vector<8x512xf32> to vector<8x128xf32>
    %18 = math.tanh %17 : vector<8x128xf32>
    %19 = arith.mulf %15, %1 : vector<8x128xf32>
    %20 = arith.mulf %14, %18 : vector<8x128xf32>
    %21 = arith.addf %19, %20 : vector<8x128xf32>
    %22 = math.tanh %21 : vector<8x128xf32>
    %23 = arith.mulf %16, %22 : vector<8x128xf32>
    %24 = arith.truncf %23 : vector<8x128xf32> to vector<8x128xbf16>
    %c1_i32 = arith.constant 1 : i32
    %c0_6 = arith.constant 0 : index
    %c0_7 = arith.constant 0 : index
    %25 = vector.load %arg2[%c0_6, %c0_7] : memref<128x512xbf16, #tpu.memory_space<vmem>>, vector<128x512xbf16>
    %26 = arith.index_cast %c1_i32 : i32 to index
    %c0_8 = arith.constant 0 : index
    %c0_9 = arith.constant 0 : index
    %27 = vector.load %arg1[%26, %c0_8, %c0_9] : memref<8x8x512xf32, #tpu.memory_space<vmem>>, vector<1x8x512xf32>
    %28 = vector.shape_cast %27 : vector<1x8x512xf32> to vector<8x512xf32>
    %cst_10 = arith.constant dense<0.000000e+00> : vector<8x512xf32>
    %29 = tpu.matmul %24, %25, %cst_10 {dimension_numbers = #tpu.dot_dimension_numbers<[1], [0], [0], [1], [0, 0, 1, 1], [], []>} : vector<8x128xbf16>, vector<128x512xbf16>, vector<8x512xf32> -> vector<8x512xf32>
    %30 = arith.addf %28, %29 : vector<8x512xf32>
    %31 = vector.extract_strided_slice %30 {offsets = [0, 0], sizes = [8, 384], strides = [1, 1]} : vector<8x512xf32> to vector<8x384xf32>
    %32 = arith.negf %31 : vector<8x384xf32>
    %33 = math.exp %32 : vector<8x384xf32>
    %cst_11 = arith.constant 1.000000e+00 : f32
    %34 = vector.broadcast %cst_11 : f32 to vector<8x384xf32>
    %35 = arith.addf %34, %33 : vector<8x384xf32>
    %36 = arith.divf %34, %35 : vector<8x384xf32>
    %37 = vector.extract_strided_slice %36 {offsets = [0, 0], sizes = [8, 128], strides = [1, 1]} : vector<8x384xf32> to vector<8x128xf32>
    %38 = vector.extract_strided_slice %36 {offsets = [0, 128], sizes = [8, 128], strides = [1, 1]} : vector<8x384xf32> to vector<8x128xf32>
    %39 = vector.extract_strided_slice %36 {offsets = [0, 256], sizes = [8, 128], strides = [1, 1]} : vector<8x384xf32> to vector<8x128xf32>
    %40 = vector.extract_strided_slice %30 {offsets = [0, 384], sizes = [8, 128], strides = [1, 1]} : vector<8x512xf32> to vector<8x128xf32>
    %41 = math.tanh %40 : vector<8x128xf32>
    %42 = arith.mulf %38, %21 : vector<8x128xf32>
    %43 = arith.mulf %37, %41 : vector<8x128xf32>
    %44 = arith.addf %42, %43 : vector<8x128xf32>
    %45 = math.tanh %44 : vector<8x128xf32>
    %46 = arith.mulf %39, %45 : vector<8x128xf32>
    %47 = arith.truncf %46 : vector<8x128xf32> to vector<8x128xbf16>
    %c2_i32 = arith.constant 2 : i32
    %c0_12 = arith.constant 0 : index
    %c0_13 = arith.constant 0 : index
    %48 = vector.load %arg2[%c0_12, %c0_13] : memref<128x512xbf16, #tpu.memory_space<vmem>>, vector<128x512xbf16>
    %49 = arith.index_cast %c2_i32 : i32 to index
    %c0_14 = arith.constant 0 : index
    %c0_15 = arith.constant 0 : index
    %50 = vector.load %arg1[%49, %c0_14, %c0_15] : memref<8x8x512xf32, #tpu.memory_space<vmem>>, vector<1x8x512xf32>
    %51 = vector.shape_cast %50 : vector<1x8x512xf32> to vector<8x512xf32>
    %cst_16 = arith.constant dense<0.000000e+00> : vector<8x512xf32>
    %52 = tpu.matmul %47, %48, %cst_16 {dimension_numbers = #tpu.dot_dimension_numbers<[1], [0], [0], [1], [0, 0, 1, 1], [], []>} : vector<8x128xbf16>, vector<128x512xbf16>, vector<8x512xf32> -> vector<8x512xf32>
    %53 = arith.addf %51, %52 : vector<8x512xf32>
    %54 = vector.extract_strided_slice %53 {offsets = [0, 0], sizes = [8, 384], strides = [1, 1]} : vector<8x512xf32> to vector<8x384xf32>
    %55 = arith.negf %54 : vector<8x384xf32>
    %56 = math.exp %55 : vector<8x384xf32>
    %cst_17 = arith.constant 1.000000e+00 : f32
    %57 = vector.broadcast %cst_17 : f32 to vector<8x384xf32>
    %58 = arith.addf %57, %56 : vector<8x384xf32>
    %59 = arith.divf %57, %58 : vector<8x384xf32>
    %60 = vector.extract_strided_slice %59 {offsets = [0, 0], sizes = [8, 128], strides = [1, 1]} : vector<8x384xf32> to vector<8x128xf32>
    %61 = vector.extract_strided_slice %59 {offsets = [0, 128], sizes = [8, 128], strides = [1, 1]} : vector<8x384xf32> to vector<8x128xf32>
    %62 = vector.extract_strided_slice %59 {offsets = [0, 256], sizes = [8, 128], strides = [1, 1]} : vector<8x384xf32> to vector<8x128xf32>
    %63 = vector.extract_strided_slice %53 {offsets = [0, 384], sizes = [8, 128], strides = [1, 1]} : vector<8x512xf32> to vector<8x128xf32>
    %64 = math.tanh %63 : vector<8x128xf32>
    %65 = arith.mulf %61, %44 : vector<8x128xf32>
    %66 = arith.mulf %60, %64 : vector<8x128xf32>
    %67 = arith.addf %65, %66 : vector<8x128xf32>
    %68 = math.tanh %67 : vector<8x128xf32>
    %69 = arith.mulf %62, %68 : vector<8x128xf32>
    %70 = arith.truncf %69 : vector<8x128xf32> to vector<8x128xbf16>
    %c3_i32 = arith.constant 3 : i32
    %c0_18 = arith.constant 0 : index
    %c0_19 = arith.constant 0 : index
    %71 = vector.load %arg2[%c0_18, %c0_19] : memref<128x512xbf16, #tpu.memory_space<vmem>>, vector<128x512xbf16>
    %72 = arith.index_cast %c3_i32 : i32 to index
    %c0_20 = arith.constant 0 : index
    %c0_21 = arith.constant 0 : index
    %73 = vector.load %arg1[%72, %c0_20, %c0_21] : memref<8x8x512xf32, #tpu.memory_space<vmem>>, vector<1x8x512xf32>
    %74 = vector.shape_cast %73 : vector<1x8x512xf32> to vector<8x512xf32>
    %cst_22 = arith.constant dense<0.000000e+00> : vector<8x512xf32>
    %75 = tpu.matmul %70, %71, %cst_22 {dimension_numbers = #tpu.dot_dimension_numbers<[1], [0], [0], [1], [0, 0, 1, 1], [], []>} : vector<8x128xbf16>, vector<128x512xbf16>, vector<8x512xf32> -> vector<8x512xf32>
    %76 = arith.addf %74, %75 : vector<8x512xf32>
    %77 = vector.extract_strided_slice %76 {offsets = [0, 0], sizes = [8, 384], strides = [1, 1]} : vector<8x512xf32> to vector<8x384xf32>
    %78 = arith.negf %77 : vector<8x384xf32>
    %79 = math.exp %78 : vector<8x384xf32>
    %cst_23 = arith.constant 1.000000e+00 : f32
    %80 = vector.broadcast %cst_23 : f32 to vector<8x384xf32>
    %81 = arith.addf %80, %79 : vector<8x384xf32>
    %82 = arith.divf %80, %81 : vector<8x384xf32>
    %83 = vector.extract_strided_slice %82 {offsets = [0, 0], sizes = [8, 128], strides = [1, 1]} : vector<8x384xf32> to vector<8x128xf32>
    %84 = vector.extract_strided_slice %82 {offsets = [0, 128], sizes = [8, 128], strides = [1, 1]} : vector<8x384xf32> to vector<8x128xf32>
    %85 = vector.extract_strided_slice %82 {offsets = [0, 256], sizes = [8, 128], strides = [1, 1]} : vector<8x384xf32> to vector<8x128xf32>
    %86 = vector.extract_strided_slice %76 {offsets = [0, 384], sizes = [8, 128], strides = [1, 1]} : vector<8x512xf32> to vector<8x128xf32>
    %87 = math.tanh %86 : vector<8x128xf32>
    %88 = arith.mulf %84, %67 : vector<8x128xf32>
    %89 = arith.mulf %83, %87 : vector<8x128xf32>
    %90 = arith.addf %88, %89 : vector<8x128xf32>
    %91 = math.tanh %90 : vector<8x128xf32>
    %92 = arith.mulf %85, %91 : vector<8x128xf32>
    %93 = arith.truncf %92 : vector<8x128xf32> to vector<8x128xbf16>
    %c4_i32 = arith.constant 4 : i32
    %c0_24 = arith.constant 0 : index
    %c0_25 = arith.constant 0 : index
    %94 = vector.load %arg2[%c0_24, %c0_25] : memref<128x512xbf16, #tpu.memory_space<vmem>>, vector<128x512xbf16>
    %95 = arith.index_cast %c4_i32 : i32 to index
    %c0_26 = arith.constant 0 : index
    %c0_27 = arith.constant 0 : index
    %96 = vector.load %arg1[%95, %c0_26, %c0_27] : memref<8x8x512xf32, #tpu.memory_space<vmem>>, vector<1x8x512xf32>
    %97 = vector.shape_cast %96 : vector<1x8x512xf32> to vector<8x512xf32>
    %cst_28 = arith.constant dense<0.000000e+00> : vector<8x512xf32>
    %98 = tpu.matmul %93, %94, %cst_28 {dimension_numbers = #tpu.dot_dimension_numbers<[1], [0], [0], [1], [0, 0, 1, 1], [], []>} : vector<8x128xbf16>, vector<128x512xbf16>, vector<8x512xf32> -> vector<8x512xf32>
    %99 = arith.addf %97, %98 : vector<8x512xf32>
    %100 = vector.extract_strided_slice %99 {offsets = [0, 0], sizes = [8, 384], strides = [1, 1]} : vector<8x512xf32> to vector<8x384xf32>
    %101 = arith.negf %100 : vector<8x384xf32>
    %102 = math.exp %101 : vector<8x384xf32>
    %cst_29 = arith.constant 1.000000e+00 : f32
    %103 = vector.broadcast %cst_29 : f32 to vector<8x384xf32>
    %104 = arith.addf %103, %102 : vector<8x384xf32>
    %105 = arith.divf %103, %104 : vector<8x384xf32>
    %106 = vector.extract_strided_slice %105 {offsets = [0, 0], sizes = [8, 128], strides = [1, 1]} : vector<8x384xf32> to vector<8x128xf32>
    %107 = vector.extract_strided_slice %105 {offsets = [0, 128], sizes = [8, 128], strides = [1, 1]} : vector<8x384xf32> to vector<8x128xf32>
    %108 = vector.extract_strided_slice %105 {offsets = [0, 256], sizes = [8, 128], strides = [1, 1]} : vector<8x384xf32> to vector<8x128xf32>
    %109 = vector.extract_strided_slice %99 {offsets = [0, 384], sizes = [8, 128], strides = [1, 1]} : vector<8x512xf32> to vector<8x128xf32>
    %110 = math.tanh %109 : vector<8x128xf32>
    %111 = arith.mulf %107, %90 : vector<8x128xf32>
    %112 = arith.mulf %106, %110 : vector<8x128xf32>
    %113 = arith.addf %111, %112 : vector<8x128xf32>
    %114 = math.tanh %113 : vector<8x128xf32>
    %115 = arith.mulf %108, %114 : vector<8x128xf32>
    %116 = arith.truncf %115 : vector<8x128xf32> to vector<8x128xbf16>
    %c5_i32 = arith.constant 5 : i32
    %c0_30 = arith.constant 0 : index
    %c0_31 = arith.constant 0 : index
    %117 = vector.load %arg2[%c0_30, %c0_31] : memref<128x512xbf16, #tpu.memory_space<vmem>>, vector<128x512xbf16>
    %118 = arith.index_cast %c5_i32 : i32 to index
    %c0_32 = arith.constant 0 : index
    %c0_33 = arith.constant 0 : index
    %119 = vector.load %arg1[%118, %c0_32, %c0_33] : memref<8x8x512xf32, #tpu.memory_space<vmem>>, vector<1x8x512xf32>
    %120 = vector.shape_cast %119 : vector<1x8x512xf32> to vector<8x512xf32>
    %cst_34 = arith.constant dense<0.000000e+00> : vector<8x512xf32>
    %121 = tpu.matmul %116, %117, %cst_34 {dimension_numbers = #tpu.dot_dimension_numbers<[1], [0], [0], [1], [0, 0, 1, 1], [], []>} : vector<8x128xbf16>, vector<128x512xbf16>, vector<8x512xf32> -> vector<8x512xf32>
    %122 = arith.addf %120, %121 : vector<8x512xf32>
    %123 = vector.extract_strided_slice %122 {offsets = [0, 0], sizes = [8, 384], strides = [1, 1]} : vector<8x512xf32> to vector<8x384xf32>
    %124 = arith.negf %123 : vector<8x384xf32>
    %125 = math.exp %124 : vector<8x384xf32>
    %cst_35 = arith.constant 1.000000e+00 : f32
    %126 = vector.broadcast %cst_35 : f32 to vector<8x384xf32>
    %127 = arith.addf %126, %125 : vector<8x384xf32>
    %128 = arith.divf %126, %127 : vector<8x384xf32>
    %129 = vector.extract_strided_slice %128 {offsets = [0, 0], sizes = [8, 128], strides = [1, 1]} : vector<8x384xf32> to vector<8x128xf32>
    %130 = vector.extract_strided_slice %128 {offsets = [0, 128], sizes = [8, 128], strides = [1, 1]} : vector<8x384xf32> to vector<8x128xf32>
    %131 = vector.extract_strided_slice %128 {offsets = [0, 256], sizes = [8, 128], strides = [1, 1]} : vector<8x384xf32> to vector<8x128xf32>
    %132 = vector.extract_strided_slice %122 {offsets = [0, 384], sizes = [8, 128], strides = [1, 1]} : vector<8x512xf32> to vector<8x128xf32>
    %133 = math.tanh %132 : vector<8x128xf32>
    %134 = arith.mulf %130, %113 : vector<8x128xf32>
    %135 = arith.mulf %129, %133 : vector<8x128xf32>
    %136 = arith.addf %134, %135 : vector<8x128xf32>
    %137 = math.tanh %136 : vector<8x128xf32>
    %138 = arith.mulf %131, %137 : vector<8x128xf32>
    %139 = arith.truncf %138 : vector<8x128xf32> to vector<8x128xbf16>
    %c6_i32 = arith.constant 6 : i32
    %c0_36 = arith.constant 0 : index
    %c0_37 = arith.constant 0 : index
    %140 = vector.load %arg2[%c0_36, %c0_37] : memref<128x512xbf16, #tpu.memory_space<vmem>>, vector<128x512xbf16>
    %141 = arith.index_cast %c6_i32 : i32 to index
    %c0_38 = arith.constant 0 : index
    %c0_39 = arith.constant 0 : index
    %142 = vector.load %arg1[%141, %c0_38, %c0_39] : memref<8x8x512xf32, #tpu.memory_space<vmem>>, vector<1x8x512xf32>
    %143 = vector.shape_cast %142 : vector<1x8x512xf32> to vector<8x512xf32>
    %cst_40 = arith.constant dense<0.000000e+00> : vector<8x512xf32>
    %144 = tpu.matmul %139, %140, %cst_40 {dimension_numbers = #tpu.dot_dimension_numbers<[1], [0], [0], [1], [0, 0, 1, 1], [], []>} : vector<8x128xbf16>, vector<128x512xbf16>, vector<8x512xf32> -> vector<8x512xf32>
    %145 = arith.addf %143, %144 : vector<8x512xf32>
    %146 = vector.extract_strided_slice %145 {offsets = [0, 0], sizes = [8, 384], strides = [1, 1]} : vector<8x512xf32> to vector<8x384xf32>
    %147 = arith.negf %146 : vector<8x384xf32>
    %148 = math.exp %147 : vector<8x384xf32>
    %cst_41 = arith.constant 1.000000e+00 : f32
    %149 = vector.broadcast %cst_41 : f32 to vector<8x384xf32>
    %150 = arith.addf %149, %148 : vector<8x384xf32>
    %151 = arith.divf %149, %150 : vector<8x384xf32>
    %152 = vector.extract_strided_slice %151 {offsets = [0, 0], sizes = [8, 128], strides = [1, 1]} : vector<8x384xf32> to vector<8x128xf32>
    %153 = vector.extract_strided_slice %151 {offsets = [0, 128], sizes = [8, 128], strides = [1, 1]} : vector<8x384xf32> to vector<8x128xf32>
    %154 = vector.extract_strided_slice %151 {offsets = [0, 256], sizes = [8, 128], strides = [1, 1]} : vector<8x384xf32> to vector<8x128xf32>
    %155 = vector.extract_strided_slice %145 {offsets = [0, 384], sizes = [8, 128], strides = [1, 1]} : vector<8x512xf32> to vector<8x128xf32>
    %156 = math.tanh %155 : vector<8x128xf32>
    %157 = arith.mulf %153, %136 : vector<8x128xf32>
    %158 = arith.mulf %152, %156 : vector<8x128xf32>
    %159 = arith.addf %157, %158 : vector<8x128xf32>
    %160 = math.tanh %159 : vector<8x128xf32>
    %161 = arith.mulf %154, %160 : vector<8x128xf32>
    %162 = arith.truncf %161 : vector<8x128xf32> to vector<8x128xbf16>
    %c7_i32 = arith.constant 7 : i32
    %c0_42 = arith.constant 0 : index
    %c0_43 = arith.constant 0 : index
    %163 = vector.load %arg2[%c0_42, %c0_43] : memref<128x512xbf16, #tpu.memory_space<vmem>>, vector<128x512xbf16>
    %164 = arith.index_cast %c7_i32 : i32 to index
    %c0_44 = arith.constant 0 : index
    %c0_45 = arith.constant 0 : index
    %165 = vector.load %arg1[%164, %c0_44, %c0_45] : memref<8x8x512xf32, #tpu.memory_space<vmem>>, vector<1x8x512xf32>
    %166 = vector.shape_cast %165 : vector<1x8x512xf32> to vector<8x512xf32>
    %cst_46 = arith.constant dense<0.000000e+00> : vector<8x512xf32>
    %167 = tpu.matmul %162, %163, %cst_46 {dimension_numbers = #tpu.dot_dimension_numbers<[1], [0], [0], [1], [0, 0, 1, 1], [], []>} : vector<8x128xbf16>, vector<128x512xbf16>, vector<8x512xf32> -> vector<8x512xf32>
    %168 = arith.addf %166, %167 : vector<8x512xf32>
    %169 = vector.extract_strided_slice %168 {offsets = [0, 0], sizes = [8, 384], strides = [1, 1]} : vector<8x512xf32> to vector<8x384xf32>
    %170 = arith.negf %169 : vector<8x384xf32>
    %171 = math.exp %170 : vector<8x384xf32>
    %cst_47 = arith.constant 1.000000e+00 : f32
    %172 = vector.broadcast %cst_47 : f32 to vector<8x384xf32>
    %173 = arith.addf %172, %171 : vector<8x384xf32>
    %174 = arith.divf %172, %173 : vector<8x384xf32>
    %175 = vector.extract_strided_slice %174 {offsets = [0, 0], sizes = [8, 128], strides = [1, 1]} : vector<8x384xf32> to vector<8x128xf32>
    %176 = vector.extract_strided_slice %174 {offsets = [0, 128], sizes = [8, 128], strides = [1, 1]} : vector<8x384xf32> to vector<8x128xf32>
    %177 = vector.extract_strided_slice %174 {offsets = [0, 256], sizes = [8, 128], strides = [1, 1]} : vector<8x384xf32> to vector<8x128xf32>
    %178 = vector.extract_strided_slice %168 {offsets = [0, 384], sizes = [8, 128], strides = [1, 1]} : vector<8x512xf32> to vector<8x128xf32>
    %179 = math.tanh %178 : vector<8x128xf32>
    %180 = arith.mulf %176, %159 : vector<8x128xf32>
    %181 = arith.mulf %175, %179 : vector<8x128xf32>
    %182 = arith.addf %180, %181 : vector<8x128xf32>
    %183 = math.tanh %182 : vector<8x128xf32>
    %184 = arith.mulf %177, %183 : vector<8x128xf32>
    %185 = arith.truncf %184 : vector<8x128xf32> to vector<8x128xbf16>
    %c8_i32 = arith.constant 8 : i32
    %186 = arith.extf %185 : vector<8x128xbf16> to vector<8x128xf32>
    %c0_48 = arith.constant 0 : index
    %c0_49 = arith.constant 0 : index
    %187 = vector.load %arg3[%c0_48, %c0_49] : memref<8x128xf32, #tpu.memory_space<vmem>>, vector<8x128xf32>
    tpu.vector_store %arg3[%c0_48, %c0_49], %186 {strides = array<i32>} : memref<8x128xf32, #tpu.memory_space<vmem>>, vector<8x128xf32>,
    return
  }
  func.func @transform_0(%arg0: i32) -> (i32, i32, i32) {
    %c0_i32 = arith.constant 0 : i32
    %c0_i32_0 = arith.constant 0 : i32
    %c0_i32_1 = arith.constant 0 : i32
    return %c0_i32, %arg0, %c0_i32_0 : i32, i32, i32
  }
  func.func @transform_1(%arg0: i32) -> (i32, i32) {
    %c0_i32 = arith.constant 0 : i32
    %c0_i32_0 = arith.constant 0 : i32
    %c0_i32_1 = arith.constant 0 : i32
    return %c0_i32, %c0_i32_0 : i32, i32
  }
  func.func @transform_2(%arg0: i32) -> (i32, i32) {
    %c0_i32 = arith.constant 0 : i32
    %c0_i32_0 = arith.constant 0 : i32
    return %arg0, %c0_i32 : i32, i32
  }
}

</mosaic_0001>

<llo_original>
// kernel: tpu_custom_call.1
$region0: #{tpu_custom_call.1}
  #allocation0 [shape = 'u32[]', space=smem, size = 0x4, offset = 0x4, fixed_abs, tag = 'smem constant byte address 0x4 - core index']
  #allocation1 [shape = 'u32[144,128]{1,0:T(1,128)}', space=vmem, size = 0x12000, scoped, tag = 'internal scratch']
  %s0 = inlined_call_operand.hbm [shape: f32[8,8,512], index: 0, kind: input, shape index: {}]
  %s1 = inlined_call_operand.hbm [shape: bf16[128,512], index: 1, kind: input, shape index: {}]
  %s2 = inlined_call_operand.hbm [shape: f32[8,128], index: 2, kind: output, shape index: {}]
  %s3 = sld [smem:[#allocation0]]
  $region26: #{tpu_custom_call.1} parent=0
    _
  %s5 = ssub.s32 1, %s3
  %s6 = scalar_select 0, %s5, %s3
  $region1: #{tpu_custom_call.1} parent=0
    #allocation2 [shape = 'u8[131072]{0}', space=vmem, size = 0x20000, scoped, tag = 'input window, operand 0, single buffered']
    #allocation3 [shape = 's32[1]{0}', space=sflag, size = 0x4, scoped, tag = 'scoped memory for tpu_custom_call.1']
    #allocation4 [shape = 's32[1]{0}', space=sflag, size = 0x4, scoped, tag = 'scoped memory for tpu_custom_call.1']
    #allocation5 [shape = 'u8[131072]{0}', space=vmem, size = 0x20000, scoped, tag = 'input window, operand 1, single buffered']
    #allocation6 [shape = 's32[1]{0}', space=sflag, size = 0x4, scoped, tag = 'scoped memory for tpu_custom_call.1']
    #allocation7 [shape = 'u8[4096]{0}', space=vmem, size = 0x1000, scoped, tag = 'output window, operand 0, single buffered']
    %7 = vsyncpa [#allocation3], 0
    %8 = vsyncpa [#allocation6], 0
    %9 = vsyncpa [#allocation4], 0
    // Predicated region
    $region2: #{tpu_custom_call.1} parent=1 // pred_check
      _
    $region3: #{tpu_custom_call.1} parent=1 // pred_check_branch
      %11 = sbr.rel (0) target = $region5
    $region4: #{tpu_custom_call.1} parent=1 // pred_region
      %s13 = ssub.s32 4096, 4096
      %14 = vsyncadd [#allocation3], %s13
      %s15 = sshll.u32 [#allocation2], 4
      %s16 = int_to_ptr.vmem [resolvable:$true] %s15
      %21 = dma.hbm_to_vmem [thread:$0]  %s0, 4096, %s16, [#allocation3], 512, 512, 32
    $region5: #{tpu_custom_call.1} parent=1 // pred_fallthru
      _
    // Predicated region
    $region6: #{tpu_custom_call.1} parent=1 // pred_check
      _
    $region7: #{tpu_custom_call.1} parent=1 // pred_check_branch
      %23 = sbr.rel (0) target = $region9
    $region8: #{tpu_custom_call.1} parent=1 // pred_region
      %s25 = ssub.s32 4096, 4096
      %26 = vsyncadd [#allocation6], %s25
      %s27 = sshll.u32 [#allocation5], 4
      %s28 = int_to_ptr.vmem [resolvable:$true] %s27
      %33 = dma.hbm_to_vmem [thread:$0]  %s1, 4096, %s28, [#allocation6], 256, 256, 16
    $region9: #{tpu_custom_call.1} parent=1 // pred_fallthru
      _
    // Predicated region
    $region10: #{tpu_custom_call.1} parent=1 // pred_check
      _
    $region11: #{tpu_custom_call.1} parent=1 // pred_check_branch
      %35 = sbr.rel (0) target = $region13
    $region12: #{tpu_custom_call.1} parent=1 // pred_region
      %36 = dma.done [#allocation3], 4096
    $region13: #{tpu_custom_call.1} parent=1 // pred_fallthru
      _
    // Predicated region
    $region14: #{tpu_custom_call.1} parent=1 // pred_check
      _
    $region15: #{tpu_custom_call.1} parent=1 // pred_check_branch
      %38 = sbr.rel (0) target = $region17
    $region16: #{tpu_custom_call.1} parent=1 // pred_region
      %39 = dma.done [#allocation6], 4096
    $region17: #{tpu_custom_call.1} parent=1 // pred_fallthru
      _
    %v41 = vld [vmem:[#allocation5] sm:$0xff]
    %v42 = vld [vmem:[#allocation5 + $0x8] sm:$0xff]
    %v43 = vld [vmem:[#allocation5 + $0x10] sm:$0xff]
    %v44 = vld [vmem:[#allocation5 + $0x18] sm:$0xff]
    %v45 = vld [vmem:[#allocation5 + $0x20] sm:$0xff]
    %v46 = vld [vmem:[#allocation5 + $0x28] sm:$0xff]
    %v47 = vld [vmem:[#allocation5 + $0x30] sm:$0xff]
    %v48 = vld [vmem:[#allocation5 + $0x38] sm:$0xff]
    %v49 = vld [vmem:[#allocation5 + $0x40] sm:$0xff]
    %v50 = vld [vmem:[#allocation5 + $0x48] sm:$0xff]
    %v51 = vld [vmem:[#allocation5 + $0x50] sm:$0xff]
    %v52 = vld [vmem:[#allocation5 + $0x58] sm:$0xff]
    %v53 = vld [vmem:[#allocation5 + $0x60] sm:$0xff]
    %v54 = vld [vmem:[#allocation5 + $0x68] sm:$0xff]
    %v55 = vld [vmem:[#allocation5 + $0x70] sm:$0xff]
    %v56 = vld [vmem:[#allocation5 + $0x78] sm:$0xff]
    %v57 = vld [vmem:[#allocation5 + $0x80] sm:$0xff]
    %v58 = vld [vmem:[#allocation5 + $0x88] sm:$0xff]
    %v59 = vld [vmem:[#allocation5 + $0x90] sm:$0xff]
    %v60 = vld [vmem:[#allocation5 + $0x98] sm:$0xff]
    %v61 = vld [vmem:[#allocation5 + $0xa0] sm:$0xff]
    %v62 = vld [vmem:[#allocation5 + $0xa8] sm:$0xff]
    %v63 = vld [vmem:[#allocation5 + $0xb0] sm:$0xff]
    %v64 = vld [vmem:[#allocation5 + $0xb8] sm:$0xff]
    %v65 = vld [vmem:[#allocation5 + $0xc0] sm:$0xff]
    %v66 = vld [vmem:[#allocation5 + $0xc8] sm:$0xff]
    %v67 = vld [vmem:[#allocation5 + $0xd0] sm:$0xff]
    %v68 = vld [vmem:[#allocation5 + $0xd8] sm:$0xff]
    %v69 = vld [vmem:[#allocation5 + $0xe0] sm:$0xff]
    %v70 = vld [vmem:[#allocation5 + $0xe8] sm:$0xff]
    %v71 = vld [vmem:[#allocation5 + $0xf0] sm:$0xff]
    %v72 = vld [vmem:[#allocation5 + $0xf8] sm:$0xff]
    %v73 = vld [vmem:[#allocation2] sm:$0xff]
    %v74 = vld [vmem:[#allocation2 + $0x8] sm:$0xff]
    %v75 = vld [vmem:[#allocation2 + $0x10] sm:$0xff]
    %v76 = vld [vmem:[#allocation2 + $0x18] sm:$0xff]
    %v109 = vunpack.c.l.b16 %v41
    %v110 = vunpack.c.h.b16 %v41
    %v111 = vunpack.c.l.b16 %v42
    %v112 = vunpack.c.h.b16 %v42
    %v113 = vunpack.c.l.b16 %v43
    %v114 = vunpack.c.h.b16 %v43
    %v115 = vunpack.c.l.b16 %v44
    %v116 = vunpack.c.h.b16 %v44
    %v117 = vunpack.c.l.b16 %v45
    %v118 = vunpack.c.h.b16 %v45
    %v119 = vunpack.c.l.b16 %v46
    %v120 = vunpack.c.h.b16 %v46
    %v121 = vunpack.c.l.b16 %v47
    %v122 = vunpack.c.h.b16 %v47
    %v123 = vunpack.c.l.b16 %v48
    %v124 = vunpack.c.h.b16 %v48
    %v125 = vunpack.c.l.b16 %v49
    %v126 = vunpack.c.h.b16 %v49
    %v127 = vunpack.c.l.b16 %v50
    %v128 = vunpack.c.h.b16 %v50
    %v129 = vunpack.c.l.b16 %v51
    %v130 = vunpack.c.h.b16 %v51
    %v131 = vunpack.c.l.b16 %v52
    %v132 = vunpack.c.h.b16 %v52
    %v133 = vunpack.c.l.b16 %v53
    %v134 = vunpack.c.h.b16 %v53
    %v135 = vunpack.c.l.b16 %v54
    %v136 = vunpack.c.h.b16 %v54
    %v137 = vunpack.c.l.b16 %v55
    %v138 = vunpack.c.h.b16 %v55
    %v139 = vunpack.c.l.b16 %v56
    %v140 = vunpack.c.h.b16 %v56
    %v141 = vunpack.c.l.b16 %v57
    %v142 = vunpack.c.h.b16 %v57
    %v143 = vunpack.c.l.b16 %v58
    %v144 = vunpack.c.h.b16 %v58
    %v145 = vunpack.c.l.b16 %v59
    %v146 = vunpack.c.h.b16 %v59
    %v147 = vunpack.c.l.b16 %v60
    %v148 = vunpack.c.h.b16 %v60
    %v149 = vunpack.c.l.b16 %v61
    %v150 = vunpack.c.h.b16 %v61
    %v151 = vunpack.c.l.b16 %v62
    %v152 = vunpack.c.h.b16 %v62
    %v153 = vunpack.c.l.b16 %v63
    %v154 = vunpack.c.h.b16 %v63
    %v155 = vunpack.c.l.b16 %v64
    %v156 = vunpack.c.h.b16 %v64
    %v157 = vunpack.c.l.b16 %v65
    %v158 = vunpack.c.h.b16 %v65
    %v159 = vunpack.c.l.b16 %v66
    %v160 = vunpack.c.h.b16 %v66
    %v161 = vunpack.c.l.b16 %v67
    %v162 = vunpack.c.h.b16 %v67
    %v163 = vunpack.c.l.b16 %v68
    %v164 = vunpack.c.h.b16 %v68
    %v165 = vunpack.c.l.b16 %v69
    %v166 = vunpack.c.h.b16 %v69
    %v167 = vunpack.c.l.b16 %v70
    %v168 = vunpack.c.h.b16 %v70
    %v169 = vunpack.c.l.b16 %v71
    %v170 = vunpack.c.h.b16 %v71
    %v171 = vunpack.c.l.b16 %v72
    %v172 = vunpack.c.h.b16 %v72
    %v173 = vpack.c.b16 %v113, %v109
    %v174 = vpack.c.b16 %v114, %v110
    %v175 = vpack.c.b16 %v115, %v111
    %v176 = vpack.c.b16 %v116, %v112
    %v177 = vpack.c.b16 %v121, %v117
    %v178 = vpack.c.b16 %v122, %v118
    %v179 = vpack.c.b16 %v123, %v119
    %v180 = vpack.c.b16 %v124, %v120
    %v181 = vpack.c.b16 %v129, %v125
    %v182 = vpack.c.b16 %v130, %v126
    %v183 = vpack.c.b16 %v131, %v127
    %v184 = vpack.c.b16 %v132, %v128
    %v185 = vpack.c.b16 %v137, %v133
    %v186 = vpack.c.b16 %v138, %v134
    %v187 = vpack.c.b16 %v139, %v135
    %v188 = vpack.c.b16 %v140, %v136
    %v189 = vpack.c.b16 %v145, %v141
    %v190 = vpack.c.b16 %v146, %v142
    %v191 = vpack.c.b16 %v147, %v143
    %v192 = vpack.c.b16 %v148, %v144
    %v193 = vpack.c.b16 %v153, %v149
    %v194 = vpack.c.b16 %v154, %v150
    %v195 = vpack.c.b16 %v155, %v151
    %v196 = vpack.c.b16 %v156, %v152
    %v197 = vpack.c.b16 %v161, %v157
    %v198 = vpack.c.b16 %v162, %v158
    %v199 = vpack.c.b16 %v163, %v159
    %v200 = vpack.c.b16 %v164, %v160
    %v201 = vpack.c.b16 %v169, %v165
    %v202 = vpack.c.b16 %v170, %v166
    %v203 = vpack.c.b16 %v171, %v167
    %v204 = vpack.c.b16 %v172, %v168
    %237 = vmatprep.subr.bf16.mxu0 %v202
    %238 = vmatpush1.bf16.msra.mxu0 %v201
    %239 = vmatprep.subr.bf16.mxu0 %v198
    %240 = vmatpush1.bf16.msra.mxu0 %v197
    %241 = vmatprep.subr.bf16.mxu0 %v194
    %242 = vmatpush1.bf16.msra.mxu0 %v193
    %243 = vmatprep.subr.bf16.mxu0 %v190
    %244 = vmatpush1.bf16.msra.mxu0 %v189
    %245 = vmatprep.subr.bf16.mxu0 %v186
    %246 = vmatpush1.bf16.msra.mxu0 %v185
    %247 = vmatprep.subr.bf16.mxu0 %v182
    %248 = vmatpush1.bf16.msra.mxu0 %v181
    %249 = vmatprep.subr.bf16.mxu0 %v178
    %250 = vmatpush1.bf16.msra.mxu0 %v177
    %251 = vmatprep.subr.bf16.mxu0 %v174
    %252 = vmatpush1.bf16.msra.mxu0 %v173
    %253 = vmatprep.subr.bf16.mxu0 0
    %254 = vmatpush2.bf16.msra.mxu0 0
    %255 = vmatprep.subr.bf16.mxu0 0
    %256 = vmatpush2.bf16.msra.mxu0 0
    %257 = vmatprep.subr.bf16.mxu0 0
    %258 = vmatpush2.bf16.msra.mxu0 0
    %259 = vmatprep.subr.bf16.mxu0 0
    %260 = vmatpush2.bf16.msra.mxu0 0
    %261 = vmatprep.subr.bf16.mxu0 0
    %262 = vmatpush2.bf16.msra.mxu0 0
    %263 = vmatprep.subr.bf16.mxu0 0
    %264 = vmatpush2.bf16.msra.mxu0 0
    %265 = vmatprep.subr.bf16.mxu0 0
    %266 = vmatpush2.bf16.msra.mxu0 0
    %267 = vmatprep.subr.bf16.mxu0 0
    %268 = vmatpush2.bf16.msra.mxu0 0
    %269 = vmatprep.mubr.bf16.mxu0 0
    %270 = vmatmul.mubr.bf16.gmra.mxu0 0
    %v271 = vpop.f32.mrf.mxu0
    %v272 = vadd.f32 0.0, %v271
    %v273 = vpop.f32.mrf.mxu0
    %v274 = vadd.f32 0.0, %v273
    %v275 = vpop.f32.mrf.mxu0
    %v276 = vpop.f32.mrf.mxu0
    %277 = vdwg.mxu0
    %278 = vmatprep.subr.bf16.mxu0 %v204
    %279 = vmatpush1.bf16.msra.mxu0 %v203
    %280 = vmatprep.subr.bf16.mxu0 %v200
    %281 = vmatpush1.bf16.msra.mxu0 %v199
    %282 = vmatprep.subr.bf16.mxu0 %v196
    %283 = vmatpush1.bf16.msra.mxu0 %v195
    %284 = vmatprep.subr.bf16.mxu0 %v192
    %285 = vmatpush1.bf16.msra.mxu0 %v191
    %286 = vmatprep.subr.bf16.mxu0 %v188
    %287 = vmatpush1.bf16.msra.mxu0 %v187
    %288 = vmatprep.subr.bf16.mxu0 %v184
    %289 = vmatpush1.bf16.msra.mxu0 %v183
    %290 = vmatprep.subr.bf16.mxu0 %v180
    %291 = vmatpush1.bf16.msra.mxu0 %v179
    %292 = vmatprep.subr.bf16.mxu0 %v176
    %293 = vmatpush1.bf16.msra.mxu0 %v175
    %294 = vmatprep.subr.bf16.mxu0 0
    %295 = vmatpush2.bf16.msra.mxu0 0
    %296 = vmatprep.subr.bf16.mxu0 0
    %297 = vmatpush2.bf16.msra.mxu0 0
    %298 = vmatprep.subr.bf16.mxu0 0
    %299 = vmatpush2.bf16.msra.mxu0 0
    %300 = vmatprep.subr.bf16.mxu0 0
    %301 = vmatpush2.bf16.msra.mxu0 0
    %302 = vmatprep.subr.bf16.mxu0 0
    %303 = vmatpush2.bf16.msra.mxu0 0
    %304 = vmatprep.subr.bf16.mxu0 0
    %305 = vmatpush2.bf16.msra.mxu0 0
    %306 = vmatprep.subr.bf16.mxu0 0
    %307 = vmatpush2.bf16.msra.mxu0 0
    %308 = vmatprep.subr.bf16.mxu0 0
    %309 = vmatpush2.bf16.msra.mxu0 0
    %310 = vmatprep.mubr.bf16.mxu0 0
    %311 = vmatmul.mubr.bf16.gmra.mxu0 0
    %v312 = vpop.f32.mrf.mxu0
    %v313 = vadd.f32 0.0, %v312
    %v314 = vpop.f32.mrf.mxu0
    %v315 = vadd.f32 0.0, %v314
    %v316 = vpop.f32.mrf.mxu0
    %v317 = vpop.f32.mrf.mxu0
    %318 = vdwg.mxu0
    %v319 = vadd.f32 %v73, %v272
    %v320 = vadd.f32 %v74, %v274
    %v321 = vadd.f32 %v75, %v313
    %v322 = vadd.f32 %v76, %v315
    %v323 = vxor.u32 %v319, 2147483648
    %v324 = vxor.u32 %v320, 2147483648
    %v325 = vxor.u32 %v321, 2147483648
    %v326 = vmul.f32 %v323, 1.442695
    %v327 = vpow.pop %v326
    %v328 = vmul.f32 %v324, 1.442695
    %v329 = vpow.pop %v328
    %v330 = vmul.f32 %v325, 1.442695
    %v331 = vpow.pop %v330
    %v332 = vadd.f32 %v327, 1.0
    %v333 = vadd.f32 %v329, 1.0
    %v334 = vadd.f32 %v331, 1.0
    %v335 = vrcp.pop %v332
    %v336 = vmul.f32 1.0, %v335
    %v337 = vrcp.pop %v333
    %v338 = vmul.f32 1.0, %v337
    %v339 = vrcp.pop %v334
    %v340 = vmul.f32 1.0, %v339
    %v341 = vtanh.pop %v322
    %v342 = vmul.f32 %v338, 0.0
    %v343 = vmul.f32 %v336, %v341
    %v344 = vadd.f32 %v342, %v343
    %v345 = vtanh.pop %v344
    %v346 = vmul.f32 %v340, %v345
    %v347 = vpack.c.bf16 %v346, %v346
    %s348 = scalar_lea.vmem [#allocation2], 32
    %v349 = vld [vmem:[%s348] sm:$0xff]
    %v350 = vld [vmem:[%s348 + $0x8] sm:$0xff]
    %v351 = vld [vmem:[%s348 + $0x10] sm:$0xff]
    %v352 = vld [vmem:[%s348 + $0x18] sm:$0xff]
    %353 = vmatprep.subr.bf16.mxu0 %v202
    %354 = vmatpush1.bf16.msra.mxu0 %v201
    %355 = vmatprep.subr.bf16.mxu0 %v198
    %356 = vmatpush1.bf16.msra.mxu0 %v197
    %357 = vmatprep.subr.bf16.mxu0 %v194
    %358 = vmatpush1.bf16.msra.mxu0 %v193
    %359 = vmatprep.subr.bf16.mxu0 %v190
    %360 = vmatpush1.bf16.msra.mxu0 %v189
    %361 = vmatprep.subr.bf16.mxu0 %v186
    %362 = vmatpush1.bf16.msra.mxu0 %v185
    %363 = vmatprep.subr.bf16.mxu0 %v182
    %364 = vmatpush1.bf16.msra.mxu0 %v181
    %365 = vmatprep.subr.bf16.mxu0 %v178
    %366 = vmatpush1.bf16.msra.mxu0 %v177
    %367 = vmatprep.subr.bf16.mxu0 %v174
    %368 = vmatpush1.bf16.msra.mxu0 %v173
    %369 = vmatprep.subr.bf16.mxu0 0
    %370 = vmatpush2.bf16.msra.mxu0 0
    %371 = vmatprep.subr.bf16.mxu0 0
    %372 = vmatpush2.bf16.msra.mxu0 0
    %373 = vmatprep.subr.bf16.mxu0 0
    %374 = vmatpush2.bf16.msra.mxu0 0
    %375 = vmatprep.subr.bf16.mxu0 0
    %376 = vmatpush2.bf16.msra.mxu0 0
    %377 = vmatprep.subr.bf16.mxu0 0
    %378 = vmatpush2.bf16.msra.mxu0 0
    %379 = vmatprep.subr.bf16.mxu0 0
    %380 = vmatpush2.bf16.msra.mxu0 0
    %381 = vmatprep.subr.bf16.mxu0 0
    %382 = vmatpush2.bf16.msra.mxu0 0
    %383 = vmatprep.subr.bf16.mxu0 0
    %384 = vmatpush2.bf16.msra.mxu0 0
    %385 = vmatprep.mubr.bf16.mxu0 0
    %386 = vmatmul.mubr.bf16.gmra.mxu0 %v347
    %v387 = vpop.f32.mrf.mxu0
    %v388 = vadd.f32 0.0, %v387
    %v389 = vpop.f32.mrf.mxu0
    %v390 = vadd.f32 0.0, %v389
    %v391 = vpop.f32.mrf.mxu0
    %v392 = vpop.f32.mrf.mxu0
    %393 = vdwg.mxu0
    %394 = vmatprep.subr.bf16.mxu0 %v204
    %395 = vmatpush1.bf16.msra.mxu0 %v203
    %396 = vmatprep.subr.bf16.mxu0 %v200
    %397 = vmatpush1.bf16.msra.mxu0 %v199
    %398 = vmatprep.subr.bf16.mxu0 %v196
    %399 = vmatpush1.bf16.msra.mxu0 %v195
    %400 = vmatprep.subr.bf16.mxu0 %v192
    %401 = vmatpush1.bf16.msra.mxu0 %v191
    %402 = vmatprep.subr.bf16.mxu0 %v188
    %403 = vmatpush1.bf16.msra.mxu0 %v187
    %404 = vmatprep.subr.bf16.mxu0 %v184
    %405 = vmatpush1.bf16.msra.mxu0 %v183
    %406 = vmatprep.subr.bf16.mxu0 %v180
    %407 = vmatpush1.bf16.msra.mxu0 %v179
    %408 = vmatprep.subr.bf16.mxu0 %v176
    %409 = vmatpush1.bf16.msra.mxu0 %v175
    %410 = vmatprep.subr.bf16.mxu0 0
    %411 = vmatpush2.bf16.msra.mxu0 0
    %412 = vmatprep.subr.bf16.mxu0 0
    %413 = vmatpush2.bf16.msra.mxu0 0
    %414 = vmatprep.subr.bf16.mxu0 0
    %415 = vmatpush2.bf16.msra.mxu0 0
    %416 = vmatprep.subr.bf16.mxu0 0
    %417 = vmatpush2.bf16.msra.mxu0 0
    %418 = vmatprep.subr.bf16.mxu0 0
    %419 = vmatpush2.bf16.msra.mxu0 0
    %420 = vmatprep.subr.bf16.mxu0 0
    %421 = vmatpush2.bf16.msra.mxu0 0
    %422 = vmatprep.subr.bf16.mxu0 0
    %423 = vmatpush2.bf16.msra.mxu0 0
    %424 = vmatprep.subr.bf16.mxu0 0
    %425 = vmatpush2.bf16.msra.mxu0 0
    %426 = vmatprep.mubr.bf16.mxu0 0
    %427 = vmatmul.mubr.bf16.gmra.mxu0 %v347
    %v428 = vpop.f32.mrf.mxu0
    %v429 = vadd.f32 0.0, %v428
    %v430 = vpop.f32.mrf.mxu0
    %v431 = vadd.f32 0.0, %v430
    %v432 = vpop.f32.mrf.mxu0
    %v433 = vpop.f32.mrf.mxu0
    %434 = vdwg.mxu0
    %v435 = vadd.f32 %v349, %v388
    %v436 = vadd.f32 %v350, %v390
    %v437 = vadd.f32 %v351, %v429
    %v438 = vadd.f32 %v352, %v431
    %v439 = vxor.u32 %v435, 2147483648
    %v440 = vxor.u32 %v436, 2147483648
    %v441 = vxor.u32 %v437, 2147483648
    %v442 = vmul.f32 %v439, 1.442695
    %v443 = vpow.pop %v442
    %v444 = vmul.f32 %v440, 1.442695
    %v445 = vpow.pop %v444
    %v446 = vmul.f32 %v441, 1.442695
    %v447 = vpow.pop %v446
    %v448 = vadd.f32 %v443, 1.0
    %v449 = vadd.f32 %v445, 1.0
    %v450 = vadd.f32 %v447, 1.0
    %v451 = vrcp.pop %v448
    %v452 = vmul.f32 1.0, %v451
    %v453 = vrcp.pop %v449
    %v454 = vmul.f32 1.0, %v453
    %v455 = vrcp.pop %v450
    %v456 = vmul.f32 1.0, %v455
    %v457 = vtanh.pop %v438
    %v458 = vmul.f32 %v454, %v344
    %v459 = vmul.f32 %v452, %v457
    %v460 = vadd.f32 %v458, %v459
    %v461 = vtanh.pop %v460
    %v462 = vmul.f32 %v456, %v461
    %v463 = vpack.c.bf16 %v462, %v462
    %s464 = scalar_lea.vmem [#allocation2], 64
    %v465 = vld [vmem:[%s464] sm:$0xff]
    %v466 = vld [vmem:[%s464 + $0x8] sm:$0xff]
    %v467 = vld [vmem:[%s464 + $0x10] sm:$0xff]
    %v468 = vld [vmem:[%s464 + $0x18] sm:$0xff]
    %469 = vmatprep.subr.bf16.mxu0 %v202
    %470 = vmatpush1.bf16.msra.mxu0 %v201
    %471 = vmatprep.subr.bf16.mxu0 %v198
    %472 = vmatpush1.bf16.msra.mxu0 %v197
    %473 = vmatprep.subr.bf16.mxu0 %v194
    %474 = vmatpush1.bf16.msra.mxu0 %v193
    %475 = vmatprep.subr.bf16.mxu0 %v190
    %476 = vmatpush1.bf16.msra.mxu0 %v189
    %477 = vmatprep.subr.bf16.mxu0 %v186
    %478 = vmatpush1.bf16.msra.mxu0 %v185
    %479 = vmatprep.subr.bf16.mxu0 %v182
    %480 = vmatpush1.bf16.msra.mxu0 %v181
    %481 = vmatprep.subr.bf16.mxu0 %v178
    %482 = vmatpush1.bf16.msra.mxu0 %v177
    %483 = vmatprep.subr.bf16.mxu0 %v174
    %484 = vmatpush1.bf16.msra.mxu0 %v173
    %485 = vmatprep.subr.bf16.mxu0 0
    %486 = vmatpush2.bf16.msra.mxu0 0
    %487 = vmatprep.subr.bf16.mxu0 0
    %488 = vmatpush2.bf16.msra.mxu0 0
    %489 = vmatprep.subr.bf16.mxu0 0
    %490 = vmatpush2.bf16.msra.mxu0 0
    %491 = vmatprep.subr.bf16.mxu0 0
    %492 = vmatpush2.bf16.msra.mxu0 0
    %493 = vmatprep.subr.bf16.mxu0 0
    %494 = vmatpush2.bf16.msra.mxu0 0
    %495 = vmatprep.subr.bf16.mxu0 0
    %496 = vmatpush2.bf16.msra.mxu0 0
    %497 = vmatprep.subr.bf16.mxu0 0
    %498 = vmatpush2.bf16.msra.mxu0 0
    %499 = vmatprep.subr.bf16.mxu0 0
    %500 = vmatpush2.bf16.msra.mxu0 0
    %501 = vmatprep.mubr.bf16.mxu0 0
    %502 = vmatmul.mubr.bf16.gmra.mxu0 %v463
    %v503 = vpop.f32.mrf.mxu0
    %v504 = vadd.f32 0.0, %v503
    %v505 = vpop.f32.mrf.mxu0
    %v506 = vadd.f32 0.0, %v505
    %v507 = vpop.f32.mrf.mxu0
    %v508 = vpop.f32.mrf.mxu0
    %509 = vdwg.mxu0
    %510 = vmatprep.subr.bf16.mxu0 %v204
    %511 = vmatpush1.bf16.msra.mxu0 %v203
    %512 = vmatprep.subr.bf16.mxu0 %v200
    %513 = vmatpush1.bf16.msra.mxu0 %v199
    %514 = vmatprep.subr.bf16.mxu0 %v196
    %515 = vmatpush1.bf16.msra.mxu0 %v195
    %516 = vmatprep.subr.bf16.mxu0 %v192
    %517 = vmatpush1.bf16.msra.mxu0 %v191
    %518 = vmatprep.subr.bf16.mxu0 %v188
    %519 = vmatpush1.bf16.msra.mxu0 %v187
    %520 = vmatprep.subr.bf16.mxu0 %v184
    %521 = vmatpush1.bf16.msra.mxu0 %v183
    %522 = vmatprep.subr.bf16.mxu0 %v180
    %523 = vmatpush1.bf16.msra.mxu0 %v179
    %524 = vmatprep.subr.bf16.mxu0 %v176
    %525 = vmatpush1.bf16.msra.mxu0 %v175
    %526 = vmatprep.subr.bf16.mxu0 0
    %527 = vmatpush2.bf16.msra.mxu0 0
    %528 = vmatprep.subr.bf16.mxu0 0
    %529 = vmatpush2.bf16.msra.mxu0 0
    %530 = vmatprep.subr.bf16.mxu0 0
    %531 = vmatpush2.bf16.msra.mxu0 0
    %532 = vmatprep.subr.bf16.mxu0 0
    %533 = vmatpush2.bf16.msra.mxu0 0
    %534 = vmatprep.subr.bf16.mxu0 0
    %535 = vmatpush2.bf16.msra.mxu0 0
    %536 = vmatprep.subr.bf16.mxu0 0
    %537 = vmatpush2.bf16.msra.mxu0 0
    %538 = vmatprep.subr.bf16.mxu0 0
    %539 = vmatpush2.bf16.msra.mxu0 0
    %540 = vmatprep.subr.bf16.mxu0 0
    %541 = vmatpush2.bf16.msra.mxu0 0
    %542 = vmatprep.mubr.bf16.mxu0 0
    %543 = vmatmul.mubr.bf16.gmra.mxu0 %v463
    %v544 = vpop.f32.mrf.mxu0
    %v545 = vadd.f32 0.0, %v544
    %v546 = vpop.f32.mrf.mxu0
    %v547 = vadd.f32 0.0, %v546
    %v548 = vpop.f32.mrf.mxu0
    %v549 = vpop.f32.mrf.mxu0
    %550 = vdwg.mxu0
    %v551 = vadd.f32 %v465, %v504
    %v552 = vadd.f32 %v466, %v506
    %v553 = vadd.f32 %v467, %v545
    %v554 = vadd.f32 %v468, %v547
    %v555 = vxor.u32 %v551, 2147483648
    %v556 = vxor.u32 %v552, 2147483648
    %v557 = vxor.u32 %v553, 2147483648
    %v558 = vmul.f32 %v555, 1.442695
    %v559 = vpow.pop %v558
    %v560 = vmul.f32 %v556, 1.442695
    %v561 = vpow.pop %v560
    %v562 = vmul.f32 %v557, 1.442695
    %v563 = vpow.pop %v562
    %v564 = vadd.f32 %v559, 1.0
    %v565 = vadd.f32 %v561, 1.0
    %v566 = vadd.f32 %v563, 1.0
    %v567 = vrcp.pop %v564
    %v568 = vmul.f32 1.0, %v567
    %v569 = vrcp.pop %v565
    %v570 = vmul.f32 1.0, %v569
    %v571 = vrcp.pop %v566
    %v572 = vmul.f32 1.0, %v571
    %v573 = vtanh.pop %v554
    %v574 = vmul.f32 %v570, %v460
    %v575 = vmul.f32 %v568, %v573
    %v576 = vadd.f32 %v574, %v575
    %v577 = vtanh.pop %v576
    %v578 = vmul.f32 %v572, %v577
    %v579 = vpack.c.bf16 %v578, %v578
    %s580 = scalar_lea.vmem [#allocation2], 96
    %v581 = vld [vmem:[%s580] sm:$0xff]
    %v582 = vld [vmem:[%s580 + $0x8] sm:$0xff]
    %v583 = vld [vmem:[%s580 + $0x10] sm:$0xff]
    %v584 = vld [vmem:[%s580 + $0x18] sm:$0xff]
    %585 = vmatprep.subr.bf16.mxu0 %v202
    %586 = vmatpush1.bf16.msra.mxu0 %v201
    %587 = vmatprep.subr.bf16.mxu0 %v198
    %588 = vmatpush1.bf16.msra.mxu0 %v197
    %589 = vmatprep.subr.bf16.mxu0 %v194
    %590 = vmatpush1.bf16.msra.mxu0 %v193
    %591 = vmatprep.subr.bf16.mxu0 %v190
    %592 = vmatpush1.bf16.msra.mxu0 %v189
    %593 = vmatprep.subr.bf16.mxu0 %v186
    %594 = vmatpush1.bf16.msra.mxu0 %v185
    %595 = vmatprep.subr.bf16.mxu0 %v182
    %596 = vmatpush1.bf16.msra.mxu0 %v181
    %597 = vmatprep.subr.bf16.mxu0 %v178
    %598 = vmatpush1.bf16.msra.mxu0 %v177
    %599 = vmatprep.subr.bf16.mxu0 %v174
    %600 = vmatpush1.bf16.msra.mxu0 %v173
    %601 = vmatprep.subr.bf16.mxu0 0
    %602 = vmatpush2.bf16.msra.mxu0 0
    %603 = vmatprep.subr.bf16.mxu0 0
    %604 = vmatpush2.bf16.msra.mxu0 0
    %605 = vmatprep.subr.bf16.mxu0 0
    %606 = vmatpush2.bf16.msra.mxu0 0
    %607 = vmatprep.subr.bf16.mxu0 0
    %608 = vmatpush2.bf16.msra.mxu0 0
    %609 = vmatprep.subr.bf16.mxu0 0
    %610 = vmatpush2.bf16.msra.mxu0 0
    %611 = vmatprep.subr.bf16.mxu0 0
    %612 = vmatpush2.bf16.msra.mxu0 0
    %613 = vmatprep.subr.bf16.mxu0 0
    %614 = vmatpush2.bf16.msra.mxu0 0
    %615 = vmatprep.subr.bf16.mxu0 0
    %616 = vmatpush2.bf16.msra.mxu0 0
    %617 = vmatprep.mubr.bf16.mxu0 0
    %618 = vmatmul.mubr.bf16.gmra.mxu0 %v579
    %v619 = vpop.f32.mrf.mxu0
    %v620 = vadd.f32 0.0, %v619
    %v621 = vpop.f32.mrf.mxu0
    %v622 = vadd.f32 0.0, %v621
    %v623 = vpop.f32.mrf.mxu0
    %v624 = vpop.f32.mrf.mxu0
    %625 = vdwg.mxu0
    %626 = vmatprep.subr.bf16.mxu0 %v204
    %627 = vmatpush1.bf16.msra.mxu0 %v203
    %628 = vmatprep.subr.bf16.mxu0 %v200
    %629 = vmatpush1.bf16.msra.mxu0 %v199
    %630 = vmatprep.subr.bf16.mxu0 %v196
    %631 = vmatpush1.bf16.msra.mxu0 %v195
    %632 = vmatprep.subr.bf16.mxu0 %v192
    %633 = vmatpush1.bf16.msra.mxu0 %v191
    %634 = vmatprep.subr.bf16.mxu0 %v188
    %635 = vmatpush1.bf16.msra.mxu0 %v187
    %636 = vmatprep.subr.bf16.mxu0 %v184
    %637 = vmatpush1.bf16.msra.mxu0 %v183
    %638 = vmatprep.subr.bf16.mxu0 %v180
    %639 = vmatpush1.bf16.msra.mxu0 %v179
    %640 = vmatprep.subr.bf16.mxu0 %v176
    %641 = vmatpush1.bf16.msra.mxu0 %v175
    %642 = vmatprep.subr.bf16.mxu0 0
    %643 = vmatpush2.bf16.msra.mxu0 0
    %644 = vmatprep.subr.bf16.mxu0 0
    %645 = vmatpush2.bf16.msra.mxu0 0
    %646 = vmatprep.subr.bf16.mxu0 0
    %647 = vmatpush2.bf16.msra.mxu0 0
    %648 = vmatprep.subr.bf16.mxu0 0
    %649 = vmatpush2.bf16.msra.mxu0 0
    %650 = vmatprep.subr.bf16.mxu0 0
    %651 = vmatpush2.bf16.msra.mxu0 0
    %652 = vmatprep.subr.bf16.mxu0 0
    %653 = vmatpush2.bf16.msra.mxu0 0
    %654 = vmatprep.subr.bf16.mxu0 0
    %655 = vmatpush2.bf16.msra.mxu0 0
    %656 = vmatprep.subr.bf16.mxu0 0
    %657 = vmatpush2.bf16.msra.mxu0 0
    %658 = vmatprep.mubr.bf16.mxu0 0
    %659 = vmatmul.mubr.bf16.gmra.mxu0 %v579
    %v660 = vpop.f32.mrf.mxu0
    %v661 = vadd.f32 0.0, %v660
    %v662 = vpop.f32.mrf.mxu0
    %v663 = vadd.f32 0.0, %v662
    %v664 = vpop.f32.mrf.mxu0
    %v665 = vpop.f32.mrf.mxu0
    %666 = vdwg.mxu0
    %v667 = vadd.f32 %v581, %v620
    %v668 = vadd.f32 %v582, %v622
    %v669 = vadd.f32 %v583, %v661
    %v670 = vadd.f32 %v584, %v663
    %v671 = vxor.u32 %v667, 2147483648
    %v672 = vxor.u32 %v668, 2147483648
    %v673 = vxor.u32 %v669, 2147483648
    %v674 = vmul.f32 %v671, 1.442695
    %v675 = vpow.pop %v674
    %v676 = vmul.f32 %v672, 1.442695
    %v677 = vpow.pop %v676
    %v678 = vmul.f32 %v673, 1.442695
    %v679 = vpow.pop %v678
    %v680 = vadd.f32 %v675, 1.0
    %v681 = vadd.f32 %v677, 1.0
    %v682 = vadd.f32 %v679, 1.0
    %v683 = vrcp.pop %v680
    %v684 = vmul.f32 1.0, %v683
    %v685 = vrcp.pop %v681
    %v686 = vmul.f32 1.0, %v685
    %v687 = vrcp.pop %v682
    %v688 = vmul.f32 1.0, %v687
    %v689 = vtanh.pop %v670
    %v690 = vmul.f32 %v686, %v576
    %v691 = vmul.f32 %v684, %v689
    %v692 = vadd.f32 %v690, %v691
    %v693 = vtanh.pop %v692
    %v694 = vmul.f32 %v688, %v693
    %v695 = vpack.c.bf16 %v694, %v694
    %s696 = scalar_lea.vmem [#allocation2], 128
    %v697 = vld [vmem:[%s696] sm:$0xff]
    %v698 = vld [vmem:[%s696 + $0x8] sm:$0xff]
    %v699 = vld [vmem:[%s696 + $0x10] sm:$0xff]
    %v700 = vld [vmem:[%s696 + $0x18] sm:$0xff]
    %701 = vmatprep.subr.bf16.mxu0 %v202
    %702 = vmatpush1.bf16.msra.mxu0 %v201
    %703 = vmatprep.subr.bf16.mxu0 %v198
    %704 = vmatpush1.bf16.msra.mxu0 %v197
    %705 = vmatprep.subr.bf16.mxu0 %v194
    %706 = vmatpush1.bf16.msra.mxu0 %v193
    %707 = vmatprep.subr.bf16.mxu0 %v190
    %708 = vmatpush1.bf16.msra.mxu0 %v189
    %709 = vmatprep.subr.bf16.mxu0 %v186
    %710 = vmatpush1.bf16.msra.mxu0 %v185
    %711 = vmatprep.subr.bf16.mxu0 %v182
    %712 = vmatpush1.bf16.msra.mxu0 %v181
    %713 = vmatprep.subr.bf16.mxu0 %v178
    %714 = vmatpush1.bf16.msra.mxu0 %v177
    %715 = vmatprep.subr.bf16.mxu0 %v174
    %716 = vmatpush1.bf16.msra.mxu0 %v173
    %717 = vmatprep.subr.bf16.mxu0 0
    %718 = vmatpush2.bf16.msra.mxu0 0
    %719 = vmatprep.subr.bf16.mxu0 0
    %720 = vmatpush2.bf16.msra.mxu0 0
    %721 = vmatprep.subr.bf16.mxu0 0
    %722 = vmatpush2.bf16.msra.mxu0 0
    %723 = vmatprep.subr.bf16.mxu0 0
    %724 = vmatpush2.bf16.msra.mxu0 0
    %725 = vmatprep.subr.bf16.mxu0 0
    %726 = vmatpush2.bf16.msra.mxu0 0
    %727 = vmatprep.subr.bf16.mxu0 0
    %728 = vmatpush2.bf16.msra.mxu0 0
    %729 = vmatprep.subr.bf16.mxu0 0
    %730 = vmatpush2.bf16.msra.mxu0 0
    %731 = vmatprep.subr.bf16.mxu0 0
    %732 = vmatpush2.bf16.msra.mxu0 0
    %733 = vmatprep.mubr.bf16.mxu0 0
    %734 = vmatmul.mubr.bf16.gmra.mxu0 %v695
    %v735 = vpop.f32.mrf.mxu0
    %v736 = vadd.f32 0.0, %v735
    %v737 = vpop.f32.mrf.mxu0
    %v738 = vadd.f32 0.0, %v737
    %v739 = vpop.f32.mrf.mxu0
    %v740 = vpop.f32.mrf.mxu0
    %741 = vdwg.mxu0
    %742 = vmatprep.subr.bf16.mxu0 %v204
    %743 = vmatpush1.bf16.msra.mxu0 %v203
    %744 = vmatprep.subr.bf16.mxu0 %v200
    %745 = vmatpush1.bf16.msra.mxu0 %v199
    %746 = vmatprep.subr.bf16.mxu0 %v196
    %747 = vmatpush1.bf16.msra.mxu0 %v195
    %748 = vmatprep.subr.bf16.mxu0 %v192
    %749 = vmatpush1.bf16.msra.mxu0 %v191
    %750 = vmatprep.subr.bf16.mxu0 %v188
    %751 = vmatpush1.bf16.msra.mxu0 %v187
    %752 = vmatprep.subr.bf16.mxu0 %v184
    %753 = vmatpush1.bf16.msra.mxu0 %v183
    %754 = vmatprep.subr.bf16.mxu0 %v180
    %755 = vmatpush1.bf16.msra.mxu0 %v179
    %756 = vmatprep.subr.bf16.mxu0 %v176
    %757 = vmatpush1.bf16.msra.mxu0 %v175
    %758 = vmatprep.subr.bf16.mxu0 0
    %759 = vmatpush2.bf16.msra.mxu0 0
    %760 = vmatprep.subr.bf16.mxu0 0
    %761 = vmatpush2.bf16.msra.mxu0 0
    %762 = vmatprep.subr.bf16.mxu0 0
    %763 = vmatpush2.bf16.msra.mxu0 0
    %764 = vmatprep.subr.bf16.mxu0 0
    %765 = vmatpush2.bf16.msra.mxu0 0
    %766 = vmatprep.subr.bf16.mxu0 0
    %767 = vmatpush2.bf16.msra.mxu0 0
    %768 = vmatprep.subr.bf16.mxu0 0
    %769 = vmatpush2.bf16.msra.mxu0 0
    %770 = vmatprep.subr.bf16.mxu0 0
    %771 = vmatpush2.bf16.msra.mxu0 0
    %772 = vmatprep.subr.bf16.mxu0 0
    %773 = vmatpush2.bf16.msra.mxu0 0
    %774 = vmatprep.mubr.bf16.mxu0 0
    %775 = vmatmul.mubr.bf16.gmra.mxu0 %v695
    %v776 = vpop.f32.mrf.mxu0
    %v777 = vadd.f32 0.0, %v776
    %v778 = vpop.f32.mrf.mxu0
    %v779 = vadd.f32 0.0, %v778
    %v780 = vpop.f32.mrf.mxu0
    %v781 = vpop.f32.mrf.mxu0
    %782 = vdwg.mxu0
    %v783 = vadd.f32 %v697, %v736
    %v784 = vadd.f32 %v698, %v738
    %v785 = vadd.f32 %v699, %v777
    %v786 = vadd.f32 %v700, %v779
    %v787 = vxor.u32 %v783, 2147483648
    %v788 = vxor.u32 %v784, 2147483648
    %v789 = vxor.u32 %v785, 2147483648
    %v790 = vmul.f32 %v787, 1.442695
    %v791 = vpow.pop %v790
    %v792 = vmul.f32 %v788, 1.442695
    %v793 = vpow.pop %v792
    %v794 = vmul.f32 %v789, 1.442695
    %v795 = vpow.pop %v794
    %v796 = vadd.f32 %v791, 1.0
    %v797 = vadd.f32 %v793, 1.0
    %v798 = vadd.f32 %v795, 1.0
    %v799 = vrcp.pop %v796
    %v800 = vmul.f32 1.0, %v799
    %v801 = vrcp.pop %v797
    %v802 = vmul.f32 1.0, %v801
    %v803 = vrcp.pop %v798
    %v804 = vmul.f32 1.0, %v803
    %v805 = vtanh.pop %v786
    %v806 = vmul.f32 %v802, %v692
    %v807 = vmul.f32 %v800, %v805
    %v808 = vadd.f32 %v806, %v807
    %v809 = vtanh.pop %v808
    %v810 = vmul.f32 %v804, %v809
    %v811 = vpack.c.bf16 %v810, %v810
    %s812 = scalar_lea.vmem [#allocation2], 160
    %v813 = vld [vmem:[%s812] sm:$0xff]
    %v814 = vld [vmem:[%s812 + $0x8] sm:$0xff]
    %v815 = vld [vmem:[%s812 + $0x10] sm:$0xff]
    %v816 = vld [vmem:[%s812 + $0x18] sm:$0xff]
    %817 = vmatprep.subr.bf16.mxu0 %v202
    %818 = vmatpush1.bf16.msra.mxu0 %v201
    %819 = vmatprep.subr.bf16.mxu0 %v198
    %820 = vmatpush1.bf16.msra.mxu0 %v197
    %821 = vmatprep.subr.bf16.mxu0 %v194
    %822 = vmatpush1.bf16.msra.mxu0 %v193
    %823 = vmatprep.subr.bf16.mxu0 %v190
    %824 = vmatpush1.bf16.msra.mxu0 %v189
    %825 = vmatprep.subr.bf16.mxu0 %v186
    %826 = vmatpush1.bf16.msra.mxu0 %v185
    %827 = vmatprep.subr.bf16.mxu0 %v182
    %828 = vmatpush1.bf16.msra.mxu0 %v181
    %829 = vmatprep.subr.bf16.mxu0 %v178
    %830 = vmatpush1.bf16.msra.mxu0 %v177
    %831 = vmatprep.subr.bf16.mxu0 %v174
    %832 = vmatpush1.bf16.msra.mxu0 %v173
    %833 = vmatprep.subr.bf16.mxu0 0
    %834 = vmatpush2.bf16.msra.mxu0 0
    %835 = vmatprep.subr.bf16.mxu0 0
    %836 = vmatpush2.bf16.msra.mxu0 0
    %837 = vmatprep.subr.bf16.mxu0 0
    %838 = vmatpush2.bf16.msra.mxu0 0
    %839 = vmatprep.subr.bf16.mxu0 0
    %840 = vmatpush2.bf16.msra.mxu0 0
    %841 = vmatprep.subr.bf16.mxu0 0
    %842 = vmatpush2.bf16.msra.mxu0 0
    %843 = vmatprep.subr.bf16.mxu0 0
    %844 = vmatpush2.bf16.msra.mxu0 0
    %845 = vmatprep.subr.bf16.mxu0 0
    %846 = vmatpush2.bf16.msra.mxu0 0
    %847 = vmatprep.subr.bf16.mxu0 0
    %848 = vmatpush2.bf16.msra.mxu0 0
    %849 = vmatprep.mubr.bf16.mxu0 0
    %850 = vmatmul.mubr.bf16.gmra.mxu0 %v811
    %v851 = vpop.f32.mrf.mxu0
    %v852 = vadd.f32 0.0, %v851
    %v853 = vpop.f32.mrf.mxu0
    %v854 = vadd.f32 0.0, %v853
    %v855 = vpop.f32.mrf.mxu0
    %v856 = vpop.f32.mrf.mxu0
    %857 = vdwg.mxu0
    %858 = vmatprep.subr.bf16.mxu0 %v204
    %859 = vmatpush1.bf16.msra.mxu0 %v203
    %860 = vmatprep.subr.bf16.mxu0 %v200
    %861 = vmatpush1.bf16.msra.mxu0 %v199
    %862 = vmatprep.subr.bf16.mxu0 %v196
    %863 = vmatpush1.bf16.msra.mxu0 %v195
    %864 = vmatprep.subr.bf16.mxu0 %v192
    %865 = vmatpush1.bf16.msra.mxu0 %v191
    %866 = vmatprep.subr.bf16.mxu0 %v188
    %867 = vmatpush1.bf16.msra.mxu0 %v187
    %868 = vmatprep.subr.bf16.mxu0 %v184
    %869 = vmatpush1.bf16.msra.mxu0 %v183
    %870 = vmatprep.subr.bf16.mxu0 %v180
    %871 = vmatpush1.bf16.msra.mxu0 %v179
    %872 = vmatprep.subr.bf16.mxu0 %v176
    %873 = vmatpush1.bf16.msra.mxu0 %v175
    %874 = vmatprep.subr.bf16.mxu0 0
    %875 = vmatpush2.bf16.msra.mxu0 0
    %876 = vmatprep.subr.bf16.mxu0 0
    %877 = vmatpush2.bf16.msra.mxu0 0
    %878 = vmatprep.subr.bf16.mxu0 0
    %879 = vmatpush2.bf16.msra.mxu0 0
    %880 = vmatprep.subr.bf16.mxu0 0
    %881 = vmatpush2.bf16.msra.mxu0 0
    %882 = vmatprep.subr.bf16.mxu0 0
    %883 = vmatpush2.bf16.msra.mxu0 0
    %884 = vmatprep.subr.bf16.mxu0 0
    %885 = vmatpush2.bf16.msra.mxu0 0
    %886 = vmatprep.subr.bf16.mxu0 0
    %887 = vmatpush2.bf16.msra.mxu0 0
    %888 = vmatprep.subr.bf16.mxu0 0
    %889 = vmatpush2.bf16.msra.mxu0 0
    %890 = vmatprep.mubr.bf16.mxu0 0
    %891 = vmatmul.mubr.bf16.gmra.mxu0 %v811
    %v892 = vpop.f32.mrf.mxu0
    %v893 = vadd.f32 0.0, %v892
    %v894 = vpop.f32.mrf.mxu0
    %v895 = vadd.f32 0.0, %v894
    %v896 = vpop.f32.mrf.mxu0
    %v897 = vpop.f32.mrf.mxu0
    %898 = vdwg.mxu0
    %v899 = vadd.f32 %v813, %v852
    %v900 = vadd.f32 %v814, %v854
    %v901 = vadd.f32 %v815, %v893
    %v902 = vadd.f32 %v816, %v895
    %v903 = vxor.u32 %v899, 2147483648
    %v904 = vxor.u32 %v900, 2147483648
    %v905 = vxor.u32 %v901, 2147483648
    %v906 = vmul.f32 %v903, 1.442695
    %v907 = vpow.pop %v906
    %v908 = vmul.f32 %v904, 1.442695
    %v909 = vpow.pop %v908
    %v910 = vmul.f32 %v905, 1.442695
    %v911 = vpow.pop %v910
    %v912 = vadd.f32 %v907, 1.0
    %v913 = vadd.f32 %v909, 1.0
    %v914 = vadd.f32 %v911, 1.0
    %v915 = vrcp.pop %v912
    %v916 = vmul.f32 1.0, %v915
    %v917 = vrcp.pop %v913
    %v918 = vmul.f32 1.0, %v917
    %v919 = vrcp.pop %v914
    %v920 = vmul.f32 1.0, %v919
    %v921 = vtanh.pop %v902
    %v922 = vmul.f32 %v918, %v808
    %v923 = vmul.f32 %v916, %v921
    %v924 = vadd.f32 %v922, %v923
    %v925 = vtanh.pop %v924
    %v926 = vmul.f32 %v920, %v925
    %v927 = vpack.c.bf16 %v926, %v926
    %s928 = scalar_lea.vmem [#allocation2], 192
    %v929 = vld [vmem:[%s928] sm:$0xff]
    %v930 = vld [vmem:[%s928 + $0x8] sm:$0xff]
    %v931 = vld [vmem:[%s928 + $0x10] sm:$0xff]
    %v932 = vld [vmem:[%s928 + $0x18] sm:$0xff]
    %933 = vmatprep.subr.bf16.mxu0 %v202
    %934 = vmatpush1.bf16.msra.mxu0 %v201
    %935 = vmatprep.subr.bf16.mxu0 %v198
    %936 = vmatpush1.bf16.msra.mxu0 %v197
    %937 = vmatprep.subr.bf16.mxu0 %v194
    %938 = vmatpush1.bf16.msra.mxu0 %v193
    %939 = vmatprep.subr.bf16.mxu0 %v190
    %940 = vmatpush1.bf16.msra.mxu0 %v189
    %941 = vmatprep.subr.bf16.mxu0 %v186
    %942 = vmatpush1.bf16.msra.mxu0 %v185
    %943 = vmatprep.subr.bf16.mxu0 %v182
    %944 = vmatpush1.bf16.msra.mxu0 %v181
    %945 = vmatprep.subr.bf16.mxu0 %v178
    %946 = vmatpush1.bf16.msra.mxu0 %v177
    %947 = vmatprep.subr.bf16.mxu0 %v174
    %948 = vmatpush1.bf16.msra.mxu0 %v173
    %949 = vmatprep.subr.bf16.mxu0 0
    %950 = vmatpush2.bf16.msra.mxu0 0
    %951 = vmatprep.subr.bf16.mxu0 0
    %952 = vmatpush2.bf16.msra.mxu0 0
    %953 = vmatprep.subr.bf16.mxu0 0
    %954 = vmatpush2.bf16.msra.mxu0 0
    %955 = vmatprep.subr.bf16.mxu0 0
    %956 = vmatpush2.bf16.msra.mxu0 0
    %957 = vmatprep.subr.bf16.mxu0 0
    %958 = vmatpush2.bf16.msra.mxu0 0
    %959 = vmatprep.subr.bf16.mxu0 0
    %960 = vmatpush2.bf16.msra.mxu0 0
    %961 = vmatprep.subr.bf16.mxu0 0
    %962 = vmatpush2.bf16.msra.mxu0 0
    %963 = vmatprep.subr.bf16.mxu0 0
    %964 = vmatpush2.bf16.msra.mxu0 0
    %965 = vmatprep.mubr.bf16.mxu0 0
    %966 = vmatmul.mubr.bf16.gmra.mxu0 %v927
    %v967 = vpop.f32.mrf.mxu0
    %v968 = vadd.f32 0.0, %v967
    %v969 = vpop.f32.mrf.mxu0
    %v970 = vadd.f32 0.0, %v969
    %v971 = vpop.f32.mrf.mxu0
    %v972 = vpop.f32.mrf.mxu0
    %973 = vdwg.mxu0
    %974 = vmatprep.subr.bf16.mxu0 %v204
    %975 = vmatpush1.bf16.msra.mxu0 %v203
    %976 = vmatprep.subr.bf16.mxu0 %v200
    %977 = vmatpush1.bf16.msra.mxu0 %v199
    %978 = vmatprep.subr.bf16.mxu0 %v196
    %979 = vmatpush1.bf16.msra.mxu0 %v195
    %980 = vmatprep.subr.bf16.mxu0 %v192
    %981 = vmatpush1.bf16.msra.mxu0 %v191
    %982 = vmatprep.subr.bf16.mxu0 %v188
    %983 = vmatpush1.bf16.msra.mxu0 %v187
    %984 = vmatprep.subr.bf16.mxu0 %v184
    %985 = vmatpush1.bf16.msra.mxu0 %v183
    %986 = vmatprep.subr.bf16.mxu0 %v180
    %987 = vmatpush1.bf16.msra.mxu0 %v179
    %988 = vmatprep.subr.bf16.mxu0 %v176
    %989 = vmatpush1.bf16.msra.mxu0 %v175
    %990 = vmatprep.subr.bf16.mxu0 0
    %991 = vmatpush2.bf16.msra.mxu0 0
    %992 = vmatprep.subr.bf16.mxu0 0
    %993 = vmatpush2.bf16.msra.mxu0 0
    %994 = vmatprep.subr.bf16.mxu0 0
    %995 = vmatpush2.bf16.msra.mxu0 0
    %996 = vmatprep.subr.bf16.mxu0 0
    %997 = vmatpush2.bf16.msra.mxu0 0
    %998 = vmatprep.subr.bf16.mxu0 0
    %999 = vmatpush2.bf16.msra.mxu0 0
    %1000 = vmatprep.subr.bf16.mxu0 0
    %1001 = vmatpush2.bf16.msra.mxu0 0
    %1002 = vmatprep.subr.bf16.mxu0 0
    %1003 = vmatpush2.bf16.msra.mxu0 0
    %1004 = vmatprep.subr.bf16.mxu0 0
    %1005 = vmatpush2.bf16.msra.mxu0 0
    %1006 = vmatprep.mubr.bf16.mxu0 0
    %1007 = vmatmul.mubr.bf16.gmra.mxu0 %v927
    %v1008 = vpop.f32.mrf.mxu0
    %v1009 = vadd.f32 0.0, %v1008
    %v1010 = vpop.f32.mrf.mxu0
    %v1011 = vadd.f32 0.0, %v1010
    %v1012 = vpop.f32.mrf.mxu0
    %v1013 = vpop.f32.mrf.mxu0
    %1014 = vdwg.mxu0
    %v1015 = vadd.f32 %v929, %v968
    %v1016 = vadd.f32 %v930, %v970
    %v1017 = vadd.f32 %v931, %v1009
    %v1018 = vadd.f32 %v932, %v1011
    %v1019 = vxor.u32 %v1015, 2147483648
    %v1020 = vxor.u32 %v1016, 2147483648
    %v1021 = vxor.u32 %v1017, 2147483648
    %v1022 = vmul.f32 %v1019, 1.442695
    %v1023 = vpow.pop %v1022
    %v1024 = vmul.f32 %v1020, 1.442695
    %v1025 = vpow.pop %v1024
    %v1026 = vmul.f32 %v1021, 1.442695
    %v1027 = vpow.pop %v1026
    %v1028 = vadd.f32 %v1023, 1.0
    %v1029 = vadd.f32 %v1025, 1.0
    %v1030 = vadd.f32 %v1027, 1.0
    %v1031 = vrcp.pop %v1028
    %v1032 = vmul.f32 1.0, %v1031
    %v1033 = vrcp.pop %v1029
    %v1034 = vmul.f32 1.0, %v1033
    %v1035 = vrcp.pop %v1030
    %v1036 = vmul.f32 1.0, %v1035
    %v1037 = vtanh.pop %v1018
    %v1038 = vmul.f32 %v1034, %v924
    %v1039 = vmul.f32 %v1032, %v1037
    %v1040 = vadd.f32 %v1038, %v1039
    %v1041 = vtanh.pop %v1040
    %v1042 = vmul.f32 %v1036, %v1041
    %v1043 = vpack.c.bf16 %v1042, %v1042
    %s1044 = scalar_lea.vmem [#allocation2], 224
    %v1045 = vld [vmem:[%s1044] sm:$0xff]
    %v1046 = vld [vmem:[%s1044 + $0x8] sm:$0xff]
    %v1047 = vld [vmem:[%s1044 + $0x10] sm:$0xff]
    %v1048 = vld [vmem:[%s1044 + $0x18] sm:$0xff]
    %1049 = vmatprep.subr.bf16.mxu0 %v202
    %1050 = vmatpush1.bf16.msra.mxu0 %v201
    %1051 = vmatprep.subr.bf16.mxu0 %v198
    %1052 = vmatpush1.bf16.msra.mxu0 %v197
    %1053 = vmatprep.subr.bf16.mxu0 %v194
    %1054 = vmatpush1.bf16.msra.mxu0 %v193
    %1055 = vmatprep.subr.bf16.mxu0 %v190
    %1056 = vmatpush1.bf16.msra.mxu0 %v189
    %1057 = vmatprep.subr.bf16.mxu0 %v186
    %1058 = vmatpush1.bf16.msra.mxu0 %v185
    %1059 = vmatprep.subr.bf16.mxu0 %v182
    %1060 = vmatpush1.bf16.msra.mxu0 %v181
    %1061 = vmatprep.subr.bf16.mxu0 %v178
    %1062 = vmatpush1.bf16.msra.mxu0 %v177
    %1063 = vmatprep.subr.bf16.mxu0 %v174
    %1064 = vmatpush1.bf16.msra.mxu0 %v173
    %1065 = vmatprep.subr.bf16.mxu0 0
    %1066 = vmatpush2.bf16.msra.mxu0 0
    %1067 = vmatprep.subr.bf16.mxu0 0
    %1068 = vmatpush2.bf16.msra.mxu0 0
    %1069 = vmatprep.subr.bf16.mxu0 0
    %1070 = vmatpush2.bf16.msra.mxu0 0
    %1071 = vmatprep.subr.bf16.mxu0 0
    %1072 = vmatpush2.bf16.msra.mxu0 0
    %1073 = vmatprep.subr.bf16.mxu0 0
    %1074 = vmatpush2.bf16.msra.mxu0 0
    %1075 = vmatprep.subr.bf16.mxu0 0
    %1076 = vmatpush2.bf16.msra.mxu0 0
    %1077 = vmatprep.subr.bf16.mxu0 0
    %1078 = vmatpush2.bf16.msra.mxu0 0
    %1079 = vmatprep.subr.bf16.mxu0 0
    %1080 = vmatpush2.bf16.msra.mxu0 0
    %1081 = vmatprep.mubr.bf16.mxu0 0
    %1082 = vmatmul.mubr.bf16.gmra.mxu0 %v1043
    %v1083 = vpop.f32.mrf.mxu0
    %v1084 = vadd.f32 0.0, %v1083
    %v1085 = vpop.f32.mrf.mxu0
    %v1086 = vadd.f32 0.0, %v1085
    %v1087 = vpop.f32.mrf.mxu0
    %v1088 = vpop.f32.mrf.mxu0
    %1089 = vdwg.mxu0
    %1090 = vmatprep.subr.bf16.mxu0 %v204
    %1091 = vmatpush1.bf16.msra.mxu0 %v203
    %1092 = vmatprep.subr.bf16.mxu0 %v200
    %1093 = vmatpush1.bf16.msra.mxu0 %v199
    %1094 = vmatprep.subr.bf16.mxu0 %v196
    %1095 = vmatpush1.bf16.msra.mxu0 %v195
    %1096 = vmatprep.subr.bf16.mxu0 %v192
    %1097 = vmatpush1.bf16.msra.mxu0 %v191
    %1098 = vmatprep.subr.bf16.mxu0 %v188
    %1099 = vmatpush1.bf16.msra.mxu0 %v187
    %1100 = vmatprep.subr.bf16.mxu0 %v184
    %1101 = vmatpush1.bf16.msra.mxu0 %v183
    %1102 = vmatprep.subr.bf16.mxu0 %v180
    %1103 = vmatpush1.bf16.msra.mxu0 %v179
    %1104 = vmatprep.subr.bf16.mxu0 %v176
    %1105 = vmatpush1.bf16.msra.mxu0 %v175
    %1106 = vmatprep.subr.bf16.mxu0 0
    %1107 = vmatpush2.bf16.msra.mxu0 0
    %1108 = vmatprep.subr.bf16.mxu0 0
    %1109 = vmatpush2.bf16.msra.mxu0 0
    %1110 = vmatprep.subr.bf16.mxu0 0
    %1111 = vmatpush2.bf16.msra.mxu0 0
    %1112 = vmatprep.subr.bf16.mxu0 0
    %1113 = vmatpush2.bf16.msra.mxu0 0
    %1114 = vmatprep.subr.bf16.mxu0 0
    %1115 = vmatpush2.bf16.msra.mxu0 0
    %1116 = vmatprep.subr.bf16.mxu0 0
    %1117 = vmatpush2.bf16.msra.mxu0 0
    %1118 = vmatprep.subr.bf16.mxu0 0
    %1119 = vmatpush2.bf16.msra.mxu0 0
    %1120 = vmatprep.subr.bf16.mxu0 0
    %1121 = vmatpush2.bf16.msra.mxu0 0
    %1122 = vmatprep.mubr.bf16.mxu0 0
    %1123 = vmatmul.mubr.bf16.gmra.mxu0 %v1043
    %v1124 = vpop.f32.mrf.mxu0
    %v1125 = vadd.f32 0.0, %v1124
    %v1126 = vpop.f32.mrf.mxu0
    %v1127 = vadd.f32 0.0, %v1126
    %v1128 = vpop.f32.mrf.mxu0
    %v1129 = vpop.f32.mrf.mxu0
    %1130 = vdwg.mxu0
    %v1131 = vadd.f32 %v1045, %v1084
    %v1132 = vadd.f32 %v1046, %v1086
    %v1133 = vadd.f32 %v1047, %v1125
    %v1134 = vadd.f32 %v1048, %v1127
    %v1135 = vxor.u32 %v1131, 2147483648
    %v1136 = vxor.u32 %v1132, 2147483648
    %v1137 = vxor.u32 %v1133, 2147483648
    %v1138 = vmul.f32 %v1135, 1.442695
    %v1139 = vpow.pop %v1138
    %v1140 = vmul.f32 %v1136, 1.442695
    %v1141 = vpow.pop %v1140
    %v1142 = vmul.f32 %v1137, 1.442695
    %v1143 = vpow.pop %v1142
    %v1144 = vadd.f32 %v1139, 1.0
    %v1145 = vadd.f32 %v1141, 1.0
    %v1146 = vadd.f32 %v1143, 1.0
    %v1147 = vrcp.pop %v1144
    %v1148 = vmul.f32 1.0, %v1147
    %v1149 = vrcp.pop %v1145
    %v1150 = vmul.f32 1.0, %v1149
    %v1151 = vrcp.pop %v1146
    %v1152 = vmul.f32 1.0, %v1151
    %v1153 = vtanh.pop %v1134
    %v1154 = vmul.f32 %v1150, %v1040
    %v1155 = vmul.f32 %v1148, %v1153
    %v1156 = vadd.f32 %v1154, %v1155
    %v1157 = vtanh.pop %v1156
    %v1158 = vmul.f32 %v1152, %v1157
    %v1159 = vpack.c.bf16 %v1158, %v1158
    %v1160 = vunpack.c.l.bf16 %v1159
    %1161 = vst [vmem:[#allocation7] sm:$0xff] %v1160
    // Predicated region
    $region18: #{tpu_custom_call.1} parent=1 // pred_check
      _
    $region19: #{tpu_custom_call.1} parent=1 // pred_check_branch
      %1163 = sbr.rel (0) target = $region21
    $region20: #{tpu_custom_call.1} parent=1 // pred_region
      %s1165 = ssub.s32 128, 128
      %1166 = vsyncadd [#allocation4], %s1165
      %s1168 = sshll.u32 [#allocation7], 4
      %s1169 = int_to_ptr.vmem [resolvable:$true] %s1168
      %1171 = dma.vmem_to_hbm [thread:$0]  %s1169, 128, %s2, [#allocation4]
    $region21: #{tpu_custom_call.1} parent=1 // pred_fallthru
      _
    // Predicated region
    $region22: #{tpu_custom_call.1} parent=1 // pred_check
      _
    $region23: #{tpu_custom_call.1} parent=1 // pred_check_branch
      %1173 = sbr.rel (0) target = $region25
    $region24: #{tpu_custom_call.1} parent=1 // pred_region
      %1174 = dma.done [#allocation4], 128
    $region25: #{tpu_custom_call.1} parent=1 // pred_fallthru
      _
    %1175 = vsyncpa [#allocation3], 1
    %1176 = vsyncpa [#allocation6], 1
    %1177 = vsyncpa [#allocation4], 1

</llo_original>
